<compile_context>
chip_gen: v7x
topology: tpu7x:2x2x1
jax: 0.10.0
libtpu: 0.0.40
codegen_flags: <defaults>
</compile_context>

<pallas_src>
import math

import jax
import jax.numpy as jnp
from jax.experimental import pallas as pl
from jax.experimental.pallas import tpu as pltpu  # noqa: F401  (kept for parity / future scratch use)


def _erf(z):
    # Abramowitz & Stegun 7.1.26 rational approximation (max abs err ~1.5e-7, i.e.
    # float32-exact in practice). exp() lands on the EUP slot; the polynomial is a
    # handful of VPU ops on a (4,16) tile.
    a1, a2, a3, a4, a5 = (0.254829592, -0.284496736, 1.421413741,
                          -1.453152027, 1.061405429)
    p = 0.3275911
    az = jnp.abs(z)
    t = 1.0 / (1.0 + p * az)
    poly = ((((a5 * t + a4) * t + a3) * t + a2) * t + a1) * t
    e = 1.0 - poly * jnp.exp(-az * az)
    return jnp.where(z >= 0, e, -e)


def up_fused_kernel(x1_ref, x2_ref, wup_ref, bup_ref, w1_ref, b1_ref,
                    lnw_ref, lnb_ref, w2_ref, b2_ref, out_ref):
    f32 = jnp.float32
    B, C_in, L1 = x1_ref.shape
    C_half = x2_ref.shape[1]
    L = x2_ref.shape[2]
    C_mid = w1_ref.shape[0]
    K = w1_ref.shape[1] // C_in
    pad = (K - 1) // 2
    C_out = w2_ref.shape[0]

    # Load all weights once (shared by every batch element).
    wup = wup_ref[...]          # (2*C_half, C_in)   even taps stacked over odd taps
    bup = bup_ref[...]          # (2*C_half, 1)
    w1 = w1_ref[...]            # (C_mid, K*C_in)    im2col-flattened conv1 weight
    b1 = b1_ref[...]            # (C_mid, 1)
    lnw = lnw_ref[...]          # (C_mid, L)
    lnb = lnb_ref[...]          # (C_mid, L)
    w2 = w2_ref[...]            # (C_out, K*C_mid)   im2col-flattened conv2 weight
    b2 = b2_ref[...]            # (C_out, 1)

    # Stride-2 interleave as two constant selection matmuls (hoisted, batch-shared):
    # x1_up[:, 2t] = even[:, t], x1_up[:, 2t+1] = odd[:, t].
    t_idx = jax.lax.broadcasted_iota(jnp.int32, (L1, L), 0)
    l_idx = jax.lax.broadcasted_iota(jnp.int32, (L1, L), 1)
    sel_even = (l_idx == 2 * t_idx).astype(f32)          # (L1, L)
    sel_odd = (l_idx == 2 * t_idx + 1).astype(f32)       # (L1, L)

    zpad_in = jnp.zeros((C_in, pad), f32)
    zpad_mid = jnp.zeros((C_mid, pad), f32)
    inv_n = 1.0 / float(C_mid * L)
    inv_sqrt2 = 1.0 / math.sqrt(2.0)

    outs = []
    for b in range(B):  # static unroll — whole batch in one grid step
        x1b = x1_ref[b]                      # (C_in, L1)
        x2b = x2_ref[b]                      # (C_half, L)

        # --- ConvTranspose1d(k=2, s=2): one matmul for both taps, MXU interleave ---
        eo = jnp.dot(wup, x1b, preferred_element_type=f32) + bup          # (2*C_half, L1)
        x1_up = (jnp.dot(eo[:C_half], sel_even, preferred_element_type=f32)
                 + jnp.dot(eo[C_half:], sel_odd, preferred_element_type=f32))  # (C_half, L)

        # --- skip-connection concat + zero pad, all in registers ---
        x = jnp.concatenate([x2b, x1_up], axis=0)                         # (C_in, L)
        xpad = jnp.concatenate([zpad_in, x, zpad_in], axis=1)             # (C_in, L+2*pad)

        # --- Conv1d #1 as a single im2col matmul ---
        win1 = jnp.concatenate([xpad[:, k:k + L] for k in range(K)], axis=0)  # (K*C_in, L)
        h = jnp.dot(w1, win1, preferred_element_type=f32) + b1            # (C_mid, L)

        # --- LayerNorm over normalized_shape=[C_mid, L] (biased var, eps=1e-5) ---
        s = jnp.sum(jnp.sum(h, axis=1, keepdims=True), axis=0, keepdims=True)
        mean = s * inv_n
        d = h - mean
        var = jnp.sum(jnp.sum(d * d, axis=1, keepdims=True), axis=0,
                      keepdims=True) * inv_n
        y = d * jax.lax.rsqrt(var + 1e-5) * lnw + lnb                     # (C_mid, L)

        # --- Conv1d #2 as a single im2col matmul (register-level padding) ---
        ypad = jnp.concatenate([zpad_mid, y, zpad_mid], axis=1)           # (C_mid, L+2*pad)
        win2 = jnp.concatenate([ypad[:, k:k + L] for k in range(K)], axis=0)  # (K*C_mid, L)
        g = jnp.dot(w2, win2, preferred_element_type=f32) + b2            # (C_out, L)

        # --- exact GELU (erf form, matching nn.GELU() default approximate='none') ---
        outs.append(0.5 * g * (1.0 + _erf(g * inv_sqrt2)))

    # Single full-ref store of the whole batch: (B*C_out, L), all 8 sublanes used.
    out_ref[...] = jnp.concatenate(outs, axis=0)


def up_forward(x1, x2, params):
    B, C_in, L1 = x1.shape
    C_half = C_in // 2
    L = 2 * L1
    K = params["w1"].shape[-1]
    C_mid = params["w1"].shape[0]
    C_out = params["w2"].shape[0]
    f32 = jnp.float32

    # One-time parameter re-layouts (weight plumbing only — no activation glue).
    # ConvTranspose1d weight (C_in, C_half, 2) -> stacked even/odd tap matrix.
    wup = jnp.concatenate([params["w_up"][:, :, 0].T,
                           params["w_up"][:, :, 1].T], axis=0)        # (2*C_half, C_in)
    bup = jnp.concatenate([params["b_up"], params["b_up"]]).reshape(2 * C_half, 1)
    # Conv weights (C_out, C_in, K) -> im2col layout (C_out, K*C_in),
    # row index k*C_in + c  <->  window row xpad[c, k+l].
    w1f = jnp.transpose(params["w1"], (0, 2, 1)).reshape(C_mid, K * C_in)
    w2f = jnp.transpose(params["w2"], (0, 2, 1)).reshape(C_out, K * C_mid)
    b1 = params["b1"].reshape(C_mid, 1)
    b2 = params["b2"].reshape(C_out, 1)

    out_flat = pl.pallas_call(
        up_fused_kernel,
        out_shape=jax.ShapeDtypeStruct((B * C_out, L), f32),
        grid=(1,),  # single grid step: whole batch handled inside the kernel
        in_specs=[
            pl.BlockSpec((B, C_in, L1), lambda i: (0, 0, 0)),
            pl.BlockSpec((B, C_half, L), lambda i: (0, 0, 0)),
            pl.BlockSpec((2 * C_half, C_in), lambda i: (0, 0)),
            pl.BlockSpec((2 * C_half, 1), lambda i: (0, 0)),
            pl.BlockSpec((C_mid, K * C_in), lambda i: (0, 0)),
            pl.BlockSpec((C_mid, 1), lambda i: (0, 0)),
            pl.BlockSpec((C_mid, L), lambda i: (0, 0)),
            pl.BlockSpec((C_mid, L), lambda i: (0, 0)),
            pl.BlockSpec((C_out, K * C_mid), lambda i: (0, 0)),
            pl.BlockSpec((C_out, 1), lambda i: (0, 0)),
        ],
        out_specs=pl.BlockSpec((B * C_out, L), lambda i: (0, 0)),
    )(x1, x2, wup, bup, w1f, b1, params["ln_w"], params["ln_b"], w2f, b2)

    # Free row-major reshape (same contiguous layout) back to (B, C_out, L).
    return out_flat.reshape(B, C_out, L)


# ---------------- pure-JAX reference (for correctness check only) ----------------
def _conv1d_ref(x, w, b):
    K = w.shape[-1]
    pad = (K - 1) // 2
    L = x.shape[-1]
    xp = jnp.pad(x, ((0, 0), (0, 0), (pad, pad)))
    out = b[None, :, None]
    for k in range(K):
        out = out + jnp.einsum("oc,bcl->bol", w[:, :, k], xp[:, :, k:k + L])
    return out


def up_ref(x1, x2, p):
    B, C_in, L1 = x1.shape
    C_half = C_in // 2
    L = 2 * L1
    even = jnp.einsum("bct,co->bot", x1, p["w_up"][:, :, 0]) + p["b_up"][None, :, None]
    odd = jnp.einsum("bct,co->bot", x1, p["w_up"][:, :, 1]) + p["b_up"][None, :, None]
    x1_up = jnp.stack([even, odd], axis=-1).reshape(B, C_half, L)
    x = jnp.concatenate([x2, x1_up], axis=1)

    h = _conv1d_ref(x, p["w1"], p["b1"])
    mean = jnp.mean(h, axis=(1, 2), keepdims=True)
    var = jnp.mean((h - mean) ** 2, axis=(1, 2), keepdims=True)
    y = (h - mean) / jnp.sqrt(var + 1e-5) * p["ln_w"][None] + p["ln_b"][None]
    g = _conv1d_ref(y, p["w2"], p["b2"])
    return 0.5 * g * (1.0 + jax.scipy.special.erf(g / math.sqrt(2.0)))


if __name__ == "__main__":
    # Up(in_channels=8, out_channels=4, seq_length=16); mid_channels defaults to out_channels.
    B, C_in, C_out, L1, K = 2, 8, 4, 8, 7
    C_half, C_mid, L = C_in // 2, C_out, 2 * L1

    key = jax.random.PRNGKey(0)
    ks = jax.random.split(key, 10)
    params = {
        "w_up": 0.2 * jax.random.normal(ks[0], (C_in, C_half, 2), jnp.float32),
        "b_up": 0.1 * jax.random.normal(ks[1], (C_half,), jnp.float32),
        "w1": 0.2 * jax.random.normal(ks[2], (C_mid, C_in, K), jnp.float32),
        "b1": 0.1 * jax.random.normal(ks[3], (C_mid,), jnp.float32),
        "ln_w": 1.0 + 0.1 * jax.random.normal(ks[4], (C_mid, L), jnp.float32),
        "ln_b": 0.1 * jax.random.normal(ks[5], (C_mid, L), jnp.float32),
        "w2": 0.2 * jax.random.normal(ks[6], (C_out, C_mid, K), jnp.float32),
        "b2": 0.1 * jax.random.normal(ks[7], (C_out,), jnp.float32),
    }
    x1 = jax.random.normal(ks[8], (B, C_in, L1), jnp.float32)
    x2 = jax.random.normal(ks[9], (B, C_half, L), jnp.float32)

    out = jax.block_until_ready(up_forward(x1, x2, params))
    assert out.shape == (B, C_out, L)

    ref = up_ref(x1, x2, params)
    err = float(jnp.max(jnp.abs(out - ref)))
    assert err < 1e-3, f"max abs err {err}"
    print("KERNEL_OK")
</pallas_src>

<mosaic_0001>
module attributes {stable_mosaic.version = 11 : i64} {
  func.func @up_fused_kernel(%arg0: i32, %arg1: memref<2x8x8xf32, #tpu.memory_space<vmem>>, %arg2: memref<2x4x16xf32, #tpu.memory_space<vmem>>, %arg3: memref<8x8xf32, #tpu.memory_space<vmem>>, %arg4: memref<8x1xf32, #tpu.memory_space<vmem>>, %arg5: memref<4x56xf32, #tpu.memory_space<vmem>>, %arg6: memref<4x1xf32, #tpu.memory_space<vmem>>, %arg7: memref<4x16xf32, #tpu.memory_space<vmem>>, %arg8: memref<4x16xf32, #tpu.memory_space<vmem>>, %arg9: memref<4x28xf32, #tpu.memory_space<vmem>>, %arg10: memref<4x1xf32, #tpu.memory_space<vmem>>, %arg11: memref<8x16xf32, #tpu.memory_space<vmem>>) attributes {dimension_semantics = [#tpu.dimension_semantics<arbitrary>], iteration_bounds = array<i64: 1>, scalar_prefetch = 0 : i64, scratch_operands = 0 : i64, tpu.core_type = #tpu.core_type<tc>, window_params = [{pipeline_mode = #tpu.pipeline_mode<synchronous>, transform_indices = @transform_0, window_bounds = array<i64: 2, 8, 8>}, {pipeline_mode = #tpu.pipeline_mode<synchronous>, transform_indices = @transform_1, window_bounds = array<i64: 2, 4, 16>}, {pipeline_mode = #tpu.pipeline_mode<synchronous>, transform_indices = @transform_2, window_bounds = array<i64: 8, 8>}, {pipeline_mode = #tpu.pipeline_mode<synchronous>, transform_indices = @transform_3, window_bounds = array<i64: 8, 1>}, {pipeline_mode = #tpu.pipeline_mode<synchronous>, transform_indices = @transform_4, window_bounds = array<i64: 4, 56>}, {pipeline_mode = #tpu.pipeline_mode<synchronous>, transform_indices = @transform_5, window_bounds = array<i64: 4, 1>}, {pipeline_mode = #tpu.pipeline_mode<synchronous>, transform_indices = @transform_6, window_bounds = array<i64: 4, 16>}, {pipeline_mode = #tpu.pipeline_mode<synchronous>, transform_indices = @transform_7, window_bounds = array<i64: 4, 16>}, {pipeline_mode = #tpu.pipeline_mode<synchronous>, transform_indices = @transform_8, window_bounds = array<i64: 4, 28>}, {pipeline_mode = #tpu.pipeline_mode<synchronous>, transform_indices = @transform_9, window_bounds = array<i64: 4, 1>}, {pipeline_mode = #tpu.pipeline_mode<synchronous>, transform_indices = @transform_10, window_bounds = array<i64: 8, 16>}]} {
    %c0 = arith.constant 0 : index
    %c0_0 = arith.constant 0 : index
    %0 = vector.load %arg3[%c0, %c0_0] : memref<8x8xf32, #tpu.memory_space<vmem>>, vector<8x8xf32>
    %c0_1 = arith.constant 0 : index
    %c0_2 = arith.constant 0 : index
    %1 = vector.load %arg4[%c0_1, %c0_2] : memref<8x1xf32, #tpu.memory_space<vmem>>, vector<8x1xf32>
    %c0_3 = arith.constant 0 : index
    %c0_4 = arith.constant 0 : index
    %2 = vector.load %arg5[%c0_3, %c0_4] : memref<4x56xf32, #tpu.memory_space<vmem>>, vector<4x56xf32>
    %c0_5 = arith.constant 0 : index
    %c0_6 = arith.constant 0 : index
    %3 = vector.load %arg6[%c0_5, %c0_6] : memref<4x1xf32, #tpu.memory_space<vmem>>, vector<4x1xf32>
    %c0_7 = arith.constant 0 : index
    %c0_8 = arith.constant 0 : index
    %4 = vector.load %arg7[%c0_7, %c0_8] : memref<4x16xf32, #tpu.memory_space<vmem>>, vector<4x16xf32>
    %c0_9 = arith.constant 0 : index
    %c0_10 = arith.constant 0 : index
    %5 = vector.load %arg8[%c0_9, %c0_10] : memref<4x16xf32, #tpu.memory_space<vmem>>, vector<4x16xf32>
    %c0_11 = arith.constant 0 : index
    %c0_12 = arith.constant 0 : index
    %6 = vector.load %arg9[%c0_11, %c0_12] : memref<4x28xf32, #tpu.memory_space<vmem>>, vector<4x28xf32>
    %c0_13 = arith.constant 0 : index
    %c0_14 = arith.constant 0 : index
    %7 = vector.load %arg10[%c0_13, %c0_14] : memref<4x1xf32, #tpu.memory_space<vmem>>, vector<4x1xf32>
    %8 = tpu.iota {dimensions = array<i32: 0>} : vector<8x16xi32>
    %9 = tpu.iota {dimensions = array<i32: 1>} : vector<8x16xi32>
    %c2_i32 = arith.constant 2 : i32
    %10 = vector.broadcast %c2_i32 : i32 to vector<8x16xi32>
    %11 = arith.muli %10, %8 : vector<8x16xi32>
    %12 = arith.cmpi eq, %9, %11 : vector<8x16xi32>
    %13 = arith.extui %12 : vector<8x16xi1> to vector<8x16xi32>
    %14 = arith.sitofp %13 : vector<8x16xi32> to vector<8x16xf32>
    %c2_i32_15 = arith.constant 2 : i32
    %15 = vector.broadcast %c2_i32_15 : i32 to vector<8x16xi32>
    %16 = arith.muli %15, %8 : vector<8x16xi32>
    %c1_i32 = arith.constant 1 : i32
    %17 = vector.broadcast %c1_i32 : i32 to vector<8x16xi32>
    %18 = arith.addi %16, %17 : vector<8x16xi32>
    %19 = arith.cmpi eq, %9, %18 : vector<8x16xi32>
    %20 = arith.extui %19 : vector<8x16xi1> to vector<8x16xi32>
    %21 = arith.sitofp %20 : vector<8x16xi32> to vector<8x16xf32>
    %cst = arith.constant 0.000000e+00 : f32
    %22 = vector.broadcast %cst : f32 to vector<8x3xf32>
    %cst_16 = arith.constant 0.000000e+00 : f32
    %23 = vector.broadcast %cst_16 : f32 to vector<4x3xf32>
    %c0_17 = arith.constant 0 : index
    %c0_18 = arith.constant 0 : index
    %c0_19 = arith.constant 0 : index
    %24 = vector.load %arg1[%c0_17, %c0_18, %c0_19] : memref<2x8x8xf32, #tpu.memory_space<vmem>>, vector<1x8x8xf32>
    %25 = vector.shape_cast %24 : vector<1x8x8xf32> to vector<8x8xf32>
    %c0_20 = arith.constant 0 : index
    %c0_21 = arith.constant 0 : index
    %c0_22 = arith.constant 0 : index
    %26 = vector.load %arg2[%c0_20, %c0_21, %c0_22] : memref<2x4x16xf32, #tpu.memory_space<vmem>>, vector<1x4x16xf32>
    %27 = vector.shape_cast %26 : vector<1x4x16xf32> to vector<4x16xf32>
    %cst_23 = arith.constant dense<0.000000e+00> : vector<8x8xf32>
    %28 = tpu.matmul %0, %25, %cst_23 {dimension_numbers = #tpu.dot_dimension_numbers<[1], [0], [0], [1], [0, 0, 1, 1], [], []>} : vector<8x8xf32>, vector<8x8xf32>, vector<8x8xf32> -> vector<8x8xf32>
    %29 = vector.broadcast %1 : vector<8x1xf32> to vector<8x8xf32>
    %30 = arith.addf %28, %29 : vector<8x8xf32>
    %31 = vector.extract_strided_slice %30 {offsets = [0, 0], sizes = [4, 8], strides = [1, 1]} : vector<8x8xf32> to vector<4x8xf32>
    %cst_24 = arith.constant dense<0.000000e+00> : vector<4x16xf32>
    %32 = tpu.matmul %31, %14, %cst_24 {dimension_numbers = #tpu.dot_dimension_numbers<[1], [0], [0], [1], [0, 0, 1, 1], [], []>} : vector<4x8xf32>, vector<8x16xf32>, vector<4x16xf32> -> vector<4x16xf32>
    %33 = vector.extract_strided_slice %30 {offsets = [4, 0], sizes = [4, 8], strides = [1, 1]} : vector<8x8xf32> to vector<4x8xf32>
    %cst_25 = arith.constant dense<0.000000e+00> : vector<4x16xf32>
    %34 = tpu.matmul %33, %21, %cst_25 {dimension_numbers = #tpu.dot_dimension_numbers<[1], [0], [0], [1], [0, 0, 1, 1], [], []>} : vector<4x8xf32>, vector<8x16xf32>, vector<4x16xf32> -> vector<4x16xf32>
    %35 = arith.addf %32, %34 : vector<4x16xf32>
    %36 = tpu.concatenate %27, %35 in 0 : vector<4x16xf32>, vector<4x16xf32> -> vector<8x16xf32>
    %37 = tpu.concatenate %22, %36, %22 in 1 : vector<8x3xf32>, vector<8x16xf32>, vector<8x3xf32> -> vector<8x22xf32>
    %38 = vector.extract_strided_slice %37 {offsets = [0, 0], sizes = [8, 16], strides = [1, 1]} : vector<8x22xf32> to vector<8x16xf32>
    %39 = vector.extract_strided_slice %37 {offsets = [0, 1], sizes = [8, 16], strides = [1, 1]} : vector<8x22xf32> to vector<8x16xf32>
    %40 = vector.extract_strided_slice %37 {offsets = [0, 2], sizes = [8, 16], strides = [1, 1]} : vector<8x22xf32> to vector<8x16xf32>
    %41 = vector.extract_strided_slice %37 {offsets = [0, 3], sizes = [8, 16], strides = [1, 1]} : vector<8x22xf32> to vector<8x16xf32>
    %42 = vector.extract_strided_slice %37 {offsets = [0, 4], sizes = [8, 16], strides = [1, 1]} : vector<8x22xf32> to vector<8x16xf32>
    %43 = vector.extract_strided_slice %37 {offsets = [0, 5], sizes = [8, 16], strides = [1, 1]} : vector<8x22xf32> to vector<8x16xf32>
    %44 = vector.extract_strided_slice %37 {offsets = [0, 6], sizes = [8, 16], strides = [1, 1]} : vector<8x22xf32> to vector<8x16xf32>
    %45 = tpu.concatenate %38, %39, %40, %41, %42, %43, %44 in 0 : vector<8x16xf32>, vector<8x16xf32>, vector<8x16xf32>, vector<8x16xf32>, vector<8x16xf32>, vector<8x16xf32>, vector<8x16xf32> -> vector<56x16xf32>
    %cst_26 = arith.constant dense<0.000000e+00> : vector<4x16xf32>
    %46 = tpu.matmul %2, %45, %cst_26 {dimension_numbers = #tpu.dot_dimension_numbers<[1], [0], [0], [1], [0, 0, 1, 1], [], []>} : vector<4x56xf32>, vector<56x16xf32>, vector<4x16xf32> -> vector<4x16xf32>
    %47 = vector.broadcast %3 : vector<4x1xf32> to vector<4x16xf32>
    %48 = arith.addf %46, %47 : vector<4x16xf32>
    %cst_27 = arith.constant dense<0.000000e+00> : vector<4xf32>
    %49 = vector.multi_reduction <add>, %48, %cst_27 [1] : vector<4x16xf32> to vector<4xf32>
    %50 = vector.shape_cast %49 : vector<4xf32> to vector<4x1xf32>
    %cst_28 = arith.constant dense<0.000000e+00> : vector<1xf32>
    %51 = vector.multi_reduction <add>, %50, %cst_28 [0] : vector<4x1xf32> to vector<1xf32>
    %52 = vector.shape_cast %51 : vector<1xf32> to vector<1x1xf32>
    %cst_29 = arith.constant 1.562500e-02 : f32
    %53 = vector.broadcast %cst_29 : f32 to vector<1x1xf32>
    %54 = arith.mulf %52, %53 : vector<1x1xf32>
    %55 = vector.broadcast %54 : vector<1x1xf32> to vector<4x16xf32>
    %56 = arith.subf %48, %55 : vector<4x16xf32>
    %57 = arith.mulf %56, %56 : vector<4x16xf32>
    %cst_30 = arith.constant dense<0.000000e+00> : vector<4xf32>
    %58 = vector.multi_reduction <add>, %57, %cst_30 [1] : vector<4x16xf32> to vector<4xf32>
    %59 = vector.shape_cast %58 : vector<4xf32> to vector<4x1xf32>
    %cst_31 = arith.constant dense<0.000000e+00> : vector<1xf32>
    %60 = vector.multi_reduction <add>, %59, %cst_31 [0] : vector<4x1xf32> to vector<1xf32>
    %61 = vector.shape_cast %60 : vector<1xf32> to vector<1x1xf32>
    %cst_32 = arith.constant 1.562500e-02 : f32
    %62 = vector.broadcast %cst_32 : f32 to vector<1x1xf32>
    %63 = arith.mulf %61, %62 : vector<1x1xf32>
    %cst_33 = arith.constant 9.99999974E-6 : f32
    %64 = vector.broadcast %cst_33 : f32 to vector<1x1xf32>
    %65 = arith.addf %63, %64 : vector<1x1xf32>
    %66 = math.rsqrt %65 : vector<1x1xf32>
    %67 = vector.broadcast %66 : vector<1x1xf32> to vector<4x16xf32>
    %68 = arith.mulf %56, %67 : vector<4x16xf32>
    %69 = arith.mulf %68, %4 : vector<4x16xf32>
    %70 = arith.addf %69, %5 : vector<4x16xf32>
    %71 = tpu.concatenate %23, %70, %23 in 1 : vector<4x3xf32>, vector<4x16xf32>, vector<4x3xf32> -> vector<4x22xf32>
    %72 = vector.extract_strided_slice %71 {offsets = [0, 0], sizes = [4, 16], strides = [1, 1]} : vector<4x22xf32> to vector<4x16xf32>
    %73 = vector.extract_strided_slice %71 {offsets = [0, 1], sizes = [4, 16], strides = [1, 1]} : vector<4x22xf32> to vector<4x16xf32>
    %74 = vector.extract_strided_slice %71 {offsets = [0, 2], sizes = [4, 16], strides = [1, 1]} : vector<4x22xf32> to vector<4x16xf32>
    %75 = vector.extract_strided_slice %71 {offsets = [0, 3], sizes = [4, 16], strides = [1, 1]} : vector<4x22xf32> to vector<4x16xf32>
    %76 = vector.extract_strided_slice %71 {offsets = [0, 4], sizes = [4, 16], strides = [1, 1]} : vector<4x22xf32> to vector<4x16xf32>
    %77 = vector.extract_strided_slice %71 {offsets = [0, 5], sizes = [4, 16], strides = [1, 1]} : vector<4x22xf32> to vector<4x16xf32>
    %78 = vector.extract_strided_slice %71 {offsets = [0, 6], sizes = [4, 16], strides = [1, 1]} : vector<4x22xf32> to vector<4x16xf32>
    %79 = tpu.concatenate %72, %73, %74, %75, %76, %77, %78 in 0 : vector<4x16xf32>, vector<4x16xf32>, vector<4x16xf32>, vector<4x16xf32>, vector<4x16xf32>, vector<4x16xf32>, vector<4x16xf32> -> vector<28x16xf32>
    %cst_34 = arith.constant dense<0.000000e+00> : vector<4x16xf32>
    %80 = tpu.matmul %6, %79, %cst_34 {dimension_numbers = #tpu.dot_dimension_numbers<[1], [0], [0], [1], [0, 0, 1, 1], [], []>} : vector<4x28xf32>, vector<28x16xf32>, vector<4x16xf32> -> vector<4x16xf32>
    %81 = vector.broadcast %7 : vector<4x1xf32> to vector<4x16xf32>
    %82 = arith.addf %80, %81 : vector<4x16xf32>
    %cst_35 = arith.constant 5.000000e-01 : f32
    %83 = vector.broadcast %cst_35 : f32 to vector<4x16xf32>
    %84 = arith.mulf %83, %82 : vector<4x16xf32>
    %cst_36 = arith.constant 0.707106769 : f32
    %85 = vector.broadcast %cst_36 : f32 to vector<4x16xf32>
    %86 = arith.mulf %82, %85 : vector<4x16xf32>
    %87 = math.absf %86 : vector<4x16xf32>
    %cst_37 = arith.constant 0.327591091 : f32
    %88 = vector.broadcast %cst_37 : f32 to vector<4x16xf32>
    %89 = arith.mulf %88, %87 : vector<4x16xf32>
    %cst_38 = arith.constant 1.000000e+00 : f32
    %90 = vector.broadcast %cst_38 : f32 to vector<4x16xf32>
    %91 = arith.addf %90, %89 : vector<4x16xf32>
    %cst_39 = arith.constant 1.000000e+00 : f32
    %92 = vector.broadcast %cst_39 : f32 to vector<4x16xf32>
    %93 = arith.divf %92, %91 : vector<4x16xf32>
    %cst_40 = arith.constant 1.06140542 : f32
    %94 = vector.broadcast %cst_40 : f32 to vector<4x16xf32>
    %95 = arith.mulf %94, %93 : vector<4x16xf32>
    %cst_41 = arith.constant -1.45315206 : f32
    %96 = vector.broadcast %cst_41 : f32 to vector<4x16xf32>
    %97 = arith.addf %95, %96 : vector<4x16xf32>
    %98 = arith.mulf %97, %93 : vector<4x16xf32>
    %cst_42 = arith.constant 1.42141378 : f32
    %99 = vector.broadcast %cst_42 : f32 to vector<4x16xf32>
    %100 = arith.addf %98, %99 : vector<4x16xf32>
    %101 = arith.mulf %100, %93 : vector<4x16xf32>
    %cst_43 = arith.constant -0.284496725 : f32
    %102 = vector.broadcast %cst_43 : f32 to vector<4x16xf32>
    %103 = arith.addf %101, %102 : vector<4x16xf32>
    %104 = arith.mulf %103, %93 : vector<4x16xf32>
    %cst_44 = arith.constant 0.254829586 : f32
    %105 = vector.broadcast %cst_44 : f32 to vector<4x16xf32>
    %106 = arith.addf %104, %105 : vector<4x16xf32>
    %107 = arith.mulf %106, %93 : vector<4x16xf32>
    %cst_45 = arith.constant 0.000000e+00 : f32
    %108 = vector.broadcast %cst_45 : f32 to vector<4x16xf32>
    %109 = arith.subf %108, %87 : vector<4x16xf32>
    %110 = arith.mulf %109, %87 : vector<4x16xf32>
    %111 = math.exp %110 : vector<4x16xf32>
    %112 = arith.mulf %107, %111 : vector<4x16xf32>
    %cst_46 = arith.constant 1.000000e+00 : f32
    %113 = vector.broadcast %cst_46 : f32 to vector<4x16xf32>
    %114 = arith.subf %113, %112 : vector<4x16xf32>
    %cst_47 = arith.constant 0.000000e+00 : f32
    %115 = vector.broadcast %cst_47 : f32 to vector<4x16xf32>
    %116 = arith.cmpf oge, %86, %115 : vector<4x16xf32>
    %cst_48 = arith.constant 0.000000e+00 : f32
    %117 = vector.broadcast %cst_48 : f32 to vector<4x16xf32>
    %118 = arith.subf %117, %114 : vector<4x16xf32>
    %119 = arith.select %116, %114, %118 : vector<4x16xi1>, vector<4x16xf32>
    %cst_49 = arith.constant 1.000000e+00 : f32
    %120 = vector.broadcast %cst_49 : f32 to vector<4x16xf32>
    %121 = arith.addf %120, %119 : vector<4x16xf32>
    %122 = arith.mulf %84, %121 : vector<4x16xf32>
    %c1 = arith.constant 1 : index
    %c0_50 = arith.constant 0 : index
    %c0_51 = arith.constant 0 : index
    %123 = vector.load %arg1[%c1, %c0_50, %c0_51] : memref<2x8x8xf32, #tpu.memory_space<vmem>>, vector<1x8x8xf32>
    %124 = vector.shape_cast %123 : vector<1x8x8xf32> to vector<8x8xf32>
    %c1_52 = arith.constant 1 : index
    %c0_53 = arith.constant 0 : index
    %c0_54 = arith.constant 0 : index
    %125 = vector.load %arg2[%c1_52, %c0_53, %c0_54] : memref<2x4x16xf32, #tpu.memory_space<vmem>>, vector<1x4x16xf32>
    %126 = vector.shape_cast %125 : vector<1x4x16xf32> to vector<4x16xf32>
    %cst_55 = arith.constant dense<0.000000e+00> : vector<8x8xf32>
    %127 = tpu.matmul %0, %124, %cst_55 {dimension_numbers = #tpu.dot_dimension_numbers<[1], [0], [0], [1], [0, 0, 1, 1], [], []>} : vector<8x8xf32>, vector<8x8xf32>, vector<8x8xf32> -> vector<8x8xf32>
    %128 = vector.broadcast %1 : vector<8x1xf32> to vector<8x8xf32>
    %129 = arith.addf %127, %128 : vector<8x8xf32>
    %130 = vector.extract_strided_slice %129 {offsets = [0, 0], sizes = [4, 8], strides = [1, 1]} : vector<8x8xf32> to vector<4x8xf32>
    %cst_56 = arith.constant dense<0.000000e+00> : vector<4x16xf32>
    %131 = tpu.matmul %130, %14, %cst_56 {dimension_numbers = #tpu.dot_dimension_numbers<[1], [0], [0], [1], [0, 0, 1, 1], [], []>} : vector<4x8xf32>, vector<8x16xf32>, vector<4x16xf32> -> vector<4x16xf32>
    %132 = vector.extract_strided_slice %129 {offsets = [4, 0], sizes = [4, 8], strides = [1, 1]} : vector<8x8xf32> to vector<4x8xf32>
    %cst_57 = arith.constant dense<0.000000e+00> : vector<4x16xf32>
    %133 = tpu.matmul %132, %21, %cst_57 {dimension_numbers = #tpu.dot_dimension_numbers<[1], [0], [0], [1], [0, 0, 1, 1], [], []>} : vector<4x8xf32>, vector<8x16xf32>, vector<4x16xf32> -> vector<4x16xf32>
    %134 = arith.addf %131, %133 : vector<4x16xf32>
    %135 = tpu.concatenate %126, %134 in 0 : vector<4x16xf32>, vector<4x16xf32> -> vector<8x16xf32>
    %136 = tpu.concatenate %22, %135, %22 in 1 : vector<8x3xf32>, vector<8x16xf32>, vector<8x3xf32> -> vector<8x22xf32>
    %137 = vector.extract_strided_slice %136 {offsets = [0, 0], sizes = [8, 16], strides = [1, 1]} : vector<8x22xf32> to vector<8x16xf32>
    %138 = vector.extract_strided_slice %136 {offsets = [0, 1], sizes = [8, 16], strides = [1, 1]} : vector<8x22xf32> to vector<8x16xf32>
    %139 = vector.extract_strided_slice %136 {offsets = [0, 2], sizes = [8, 16], strides = [1, 1]} : vector<8x22xf32> to vector<8x16xf32>
    %140 = vector.extract_strided_slice %136 {offsets = [0, 3], sizes = [8, 16], strides = [1, 1]} : vector<8x22xf32> to vector<8x16xf32>
    %141 = vector.extract_strided_slice %136 {offsets = [0, 4], sizes = [8, 16], strides = [1, 1]} : vector<8x22xf32> to vector<8x16xf32>
    %142 = vector.extract_strided_slice %136 {offsets = [0, 5], sizes = [8, 16], strides = [1, 1]} : vector<8x22xf32> to vector<8x16xf32>
    %143 = vector.extract_strided_slice %136 {offsets = [0, 6], sizes = [8, 16], strides = [1, 1]} : vector<8x22xf32> to vector<8x16xf32>
    %144 = tpu.concatenate %137, %138, %139, %140, %141, %142, %143 in 0 : vector<8x16xf32>, vector<8x16xf32>, vector<8x16xf32>, vector<8x16xf32>, vector<8x16xf32>, vector<8x16xf32>, vector<8x16xf32> -> vector<56x16xf32>
    %cst_58 = arith.constant dense<0.000000e+00> : vector<4x16xf32>
    %145 = tpu.matmul %2, %144, %cst_58 {dimension_numbers = #tpu.dot_dimension_numbers<[1], [0], [0], [1], [0, 0, 1, 1], [], []>} : vector<4x56xf32>, vector<56x16xf32>, vector<4x16xf32> -> vector<4x16xf32>
    %146 = vector.broadcast %3 : vector<4x1xf32> to vector<4x16xf32>
    %147 = arith.addf %145, %146 : vector<4x16xf32>
    %cst_59 = arith.constant dense<0.000000e+00> : vector<4xf32>
    %148 = vector.multi_reduction <add>, %147, %cst_59 [1] : vector<4x16xf32> to vector<4xf32>
    %149 = vector.shape_cast %148 : vector<4xf32> to vector<4x1xf32>
    %cst_60 = arith.constant dense<0.000000e+00> : vector<1xf32>
    %150 = vector.multi_reduction <add>, %149, %cst_60 [0] : vector<4x1xf32> to vector<1xf32>
    %151 = vector.shape_cast %150 : vector<1xf32> to vector<1x1xf32>
    %cst_61 = arith.constant 1.562500e-02 : f32
    %152 = vector.broadcast %cst_61 : f32 to vector<1x1xf32>
    %153 = arith.mulf %151, %152 : vector<1x1xf32>
    %154 = vector.broadcast %153 : vector<1x1xf32> to vector<4x16xf32>
    %155 = arith.subf %147, %154 : vector<4x16xf32>
    %156 = arith.mulf %155, %155 : vector<4x16xf32>
    %cst_62 = arith.constant dense<0.000000e+00> : vector<4xf32>
    %157 = vector.multi_reduction <add>, %156, %cst_62 [1] : vector<4x16xf32> to vector<4xf32>
    %158 = vector.shape_cast %157 : vector<4xf32> to vector<4x1xf32>
    %cst_63 = arith.constant dense<0.000000e+00> : vector<1xf32>
    %159 = vector.multi_reduction <add>, %158, %cst_63 [0] : vector<4x1xf32> to vector<1xf32>
    %160 = vector.shape_cast %159 : vector<1xf32> to vector<1x1xf32>
    %cst_64 = arith.constant 1.562500e-02 : f32
    %161 = vector.broadcast %cst_64 : f32 to vector<1x1xf32>
    %162 = arith.mulf %160, %161 : vector<1x1xf32>
    %cst_65 = arith.constant 9.99999974E-6 : f32
    %163 = vector.broadcast %cst_65 : f32 to vector<1x1xf32>
    %164 = arith.addf %162, %163 : vector<1x1xf32>
    %165 = math.rsqrt %164 : vector<1x1xf32>
    %166 = vector.broadcast %165 : vector<1x1xf32> to vector<4x16xf32>
    %167 = arith.mulf %155, %166 : vector<4x16xf32>
    %168 = arith.mulf %167, %4 : vector<4x16xf32>
    %169 = arith.addf %168, %5 : vector<4x16xf32>
    %170 = tpu.concatenate %23, %169, %23 in 1 : vector<4x3xf32>, vector<4x16xf32>, vector<4x3xf32> -> vector<4x22xf32>
    %171 = vector.extract_strided_slice %170 {offsets = [0, 0], sizes = [4, 16], strides = [1, 1]} : vector<4x22xf32> to vector<4x16xf32>
    %172 = vector.extract_strided_slice %170 {offsets = [0, 1], sizes = [4, 16], strides = [1, 1]} : vector<4x22xf32> to vector<4x16xf32>
    %173 = vector.extract_strided_slice %170 {offsets = [0, 2], sizes = [4, 16], strides = [1, 1]} : vector<4x22xf32> to vector<4x16xf32>
    %174 = vector.extract_strided_slice %170 {offsets = [0, 3], sizes = [4, 16], strides = [1, 1]} : vector<4x22xf32> to vector<4x16xf32>
    %175 = vector.extract_strided_slice %170 {offsets = [0, 4], sizes = [4, 16], strides = [1, 1]} : vector<4x22xf32> to vector<4x16xf32>
    %176 = vector.extract_strided_slice %170 {offsets = [0, 5], sizes = [4, 16], strides = [1, 1]} : vector<4x22xf32> to vector<4x16xf32>
    %177 = vector.extract_strided_slice %170 {offsets = [0, 6], sizes = [4, 16], strides = [1, 1]} : vector<4x22xf32> to vector<4x16xf32>
    %178 = tpu.concatenate %171, %172, %173, %174, %175, %176, %177 in 0 : vector<4x16xf32>, vector<4x16xf32>, vector<4x16xf32>, vector<4x16xf32>, vector<4x16xf32>, vector<4x16xf32>, vector<4x16xf32> -> vector<28x16xf32>
    %cst_66 = arith.constant dense<0.000000e+00> : vector<4x16xf32>
    %179 = tpu.matmul %6, %178, %cst_66 {dimension_numbers = #tpu.dot_dimension_numbers<[1], [0], [0], [1], [0, 0, 1, 1], [], []>} : vector<4x28xf32>, vector<28x16xf32>, vector<4x16xf32> -> vector<4x16xf32>
    %180 = vector.broadcast %7 : vector<4x1xf32> to vector<4x16xf32>
    %181 = arith.addf %179, %180 : vector<4x16xf32>
    %cst_67 = arith.constant 5.000000e-01 : f32
    %182 = vector.broadcast %cst_67 : f32 to vector<4x16xf32>
    %183 = arith.mulf %182, %181 : vector<4x16xf32>
    %cst_68 = arith.constant 0.707106769 : f32
    %184 = vector.broadcast %cst_68 : f32 to vector<4x16xf32>
    %185 = arith.mulf %181, %184 : vector<4x16xf32>
    %186 = math.absf %185 : vector<4x16xf32>
    %cst_69 = arith.constant 0.327591091 : f32
    %187 = vector.broadcast %cst_69 : f32 to vector<4x16xf32>
    %188 = arith.mulf %187, %186 : vector<4x16xf32>
    %cst_70 = arith.constant 1.000000e+00 : f32
    %189 = vector.broadcast %cst_70 : f32 to vector<4x16xf32>
    %190 = arith.addf %189, %188 : vector<4x16xf32>
    %cst_71 = arith.constant 1.000000e+00 : f32
    %191 = vector.broadcast %cst_71 : f32 to vector<4x16xf32>
    %192 = arith.divf %191, %190 : vector<4x16xf32>
    %cst_72 = arith.constant 1.06140542 : f32
    %193 = vector.broadcast %cst_72 : f32 to vector<4x16xf32>
    %194 = arith.mulf %193, %192 : vector<4x16xf32>
    %cst_73 = arith.constant -1.45315206 : f32
    %195 = vector.broadcast %cst_73 : f32 to vector<4x16xf32>
    %196 = arith.addf %194, %195 : vector<4x16xf32>
    %197 = arith.mulf %196, %192 : vector<4x16xf32>
    %cst_74 = arith.constant 1.42141378 : f32
    %198 = vector.broadcast %cst_74 : f32 to vector<4x16xf32>
    %199 = arith.addf %197, %198 : vector<4x16xf32>
    %200 = arith.mulf %199, %192 : vector<4x16xf32>
    %cst_75 = arith.constant -0.284496725 : f32
    %201 = vector.broadcast %cst_75 : f32 to vector<4x16xf32>
    %202 = arith.addf %200, %201 : vector<4x16xf32>
    %203 = arith.mulf %202, %192 : vector<4x16xf32>
    %cst_76 = arith.constant 0.254829586 : f32
    %204 = vector.broadcast %cst_76 : f32 to vector<4x16xf32>
    %205 = arith.addf %203, %204 : vector<4x16xf32>
    %206 = arith.mulf %205, %192 : vector<4x16xf32>
    %cst_77 = arith.constant 0.000000e+00 : f32
    %207 = vector.broadcast %cst_77 : f32 to vector<4x16xf32>
    %208 = arith.subf %207, %186 : vector<4x16xf32>
    %209 = arith.mulf %208, %186 : vector<4x16xf32>
    %210 = math.exp %209 : vector<4x16xf32>
    %211 = arith.mulf %206, %210 : vector<4x16xf32>
    %cst_78 = arith.constant 1.000000e+00 : f32
    %212 = vector.broadcast %cst_78 : f32 to vector<4x16xf32>
    %213 = arith.subf %212, %211 : vector<4x16xf32>
    %cst_79 = arith.constant 0.000000e+00 : f32
    %214 = vector.broadcast %cst_79 : f32 to vector<4x16xf32>
    %215 = arith.cmpf oge, %185, %214 : vector<4x16xf32>
    %cst_80 = arith.constant 0.000000e+00 : f32
    %216 = vector.broadcast %cst_80 : f32 to vector<4x16xf32>
    %217 = arith.subf %216, %213 : vector<4x16xf32>
    %218 = arith.select %215, %213, %217 : vector<4x16xi1>, vector<4x16xf32>
    %cst_81 = arith.constant 1.000000e+00 : f32
    %219 = vector.broadcast %cst_81 : f32 to vector<4x16xf32>
    %220 = arith.addf %219, %218 : vector<4x16xf32>
    %221 = arith.mulf %183, %220 : vector<4x16xf32>
    %222 = tpu.concatenate %122, %221 in 0 : vector<4x16xf32>, vector<4x16xf32> -> vector<8x16xf32>
    %c0_82 = arith.constant 0 : index
    %c0_83 = arith.constant 0 : index
    %223 = vector.load %arg11[%c0_82, %c0_83] : memref<8x16xf32, #tpu.memory_space<vmem>>, vector<8x16xf32>
    tpu.vector_store %arg11[%c0_82, %c0_83], %222 {strides = array<i32>} : memref<8x16xf32, #tpu.memory_space<vmem>>, vector<8x16xf32>,
    return
  }
  func.func @transform_0(%arg0: i32) -> (i32, i32, i32) {
    %c0_i32 = arith.constant 0 : i32
    %c0_i32_0 = arith.constant 0 : i32
    %c0_i32_1 = arith.constant 0 : i32
    %c0_i32_2 = arith.constant 0 : i32
    return %c0_i32, %c0_i32_0, %c0_i32_1 : i32, i32, i32
  }
  func.func @transform_1(%arg0: i32) -> (i32, i32, i32) {
    %c0_i32 = arith.constant 0 : i32
    %c0_i32_0 = arith.constant 0 : i32
    %c0_i32_1 = arith.constant 0 : i32
    %c0_i32_2 = arith.constant 0 : i32
    return %c0_i32, %c0_i32_0, %c0_i32_1 : i32, i32, i32
  }
  func.func @transform_2(%arg0: i32) -> (i32, i32) {
    %c0_i32 = arith.constant 0 : i32
    %c0_i32_0 = arith.constant 0 : i32
    %c0_i32_1 = arith.constant 0 : i32
    return %c0_i32, %c0_i32_0 : i32, i32
  }
  func.func @transform_3(%arg0: i32) -> (i32, i32) {
    %c0_i32 = arith.constant 0 : i32
    %c0_i32_0 = arith.constant 0 : i32
    %c0_i32_1 = arith.constant 0 : i32
    return %c0_i32, %c0_i32_0 : i32, i32
  }
  func.func @transform_4(%arg0: i32) -> (i32, i32) {
    %c0_i32 = arith.constant 0 : i32
    %c0_i32_0 = arith.constant 0 : i32
    %c0_i32_1 = arith.constant 0 : i32
    return %c0_i32, %c0_i32_0 : i32, i32
  }
  func.func @transform_5(%arg0: i32) -> (i32, i32) {
    %c0_i32 = arith.constant 0 : i32
    %c0_i32_0 = arith.constant 0 : i32
    %c0_i32_1 = arith.constant 0 : i32
    return %c0_i32, %c0_i32_0 : i32, i32
  }
  func.func @transform_6(%arg0: i32) -> (i32, i32) {
    %c0_i32 = arith.constant 0 : i32
    %c0_i32_0 = arith.constant 0 : i32
    %c0_i32_1 = arith.constant 0 : i32
    return %c0_i32, %c0_i32_0 : i32, i32
  }
  func.func @transform_7(%arg0: i32) -> (i32, i32) {
    %c0_i32 = arith.constant 0 : i32
    %c0_i32_0 = arith.constant 0 : i32
    %c0_i32_1 = arith.constant 0 : i32
    return %c0_i32, %c0_i32_0 : i32, i32
  }
  func.func @transform_8(%arg0: i32) -> (i32, i32) {
    %c0_i32 = arith.constant 0 : i32
    %c0_i32_0 = arith.constant 0 : i32
    %c0_i32_1 = arith.constant 0 : i32
    return %c0_i32, %c0_i32_0 : i32, i32
  }
  func.func @transform_9(%arg0: i32) -> (i32, i32) {
    %c0_i32 = arith.constant 0 : i32
    %c0_i32_0 = arith.constant 0 : i32
    %c0_i32_1 = arith.constant 0 : i32
    return %c0_i32, %c0_i32_0 : i32, i32
  }
  func.func @transform_10(%arg0: i32) -> (i32, i32) {
    %c0_i32 = arith.constant 0 : i32
    %c0_i32_0 = arith.constant 0 : i32
    %c0_i32_1 = arith.constant 0 : i32
    return %c0_i32, %c0_i32_0 : i32, i32
  }
}

</mosaic_0001>

<llo_original>
// kernel: tpu_custom_call.1
$region0: #{tpu_custom_call.1}
  #allocation0 [shape = 'u32[]', space=smem, size = 0x4, offset = 0x4, fixed_abs, tag = 'smem constant byte address 0x4 - core index']
  #allocation1 [shape = 'u32[144,128]{1,0:T(1,128)}', space=vmem, size = 0x12000, scoped, tag = 'internal scratch']
  %s0 = inlined_call_operand.vmem [shape: f32[2,8,8], index: 0, kind: input, shape index: {}]
  %s1 = inlined_call_operand.hbm [shape: f32[2,4,16], index: 1, kind: input, shape index: {}]
  %s2 = inlined_call_operand.vmem [shape: f32[8,8], index: 2, kind: input, shape index: {}]
  %s3 = inlined_call_operand.vmem [shape: f32[8,1], index: 3, kind: input, shape index: {}]
  %s4 = inlined_call_operand.vmem [shape: f32[4,56], index: 4, kind: input, shape index: {}]
  %s5 = inlined_call_operand.vmem [shape: f32[4,1], index: 5, kind: input, shape index: {}]
  %s6 = inlined_call_operand.vmem [shape: f32[4,16], index: 6, kind: input, shape index: {}]
  %s7 = inlined_call_operand.vmem [shape: f32[4,16], index: 7, kind: input, shape index: {}]
  %s8 = inlined_call_operand.vmem [shape: f32[4,28], index: 8, kind: input, shape index: {}]
  %s9 = inlined_call_operand.vmem [shape: f32[4,1], index: 9, kind: input, shape index: {}]
  %s10 = inlined_call_operand.hbm [shape: f32[8,16], index: 10, kind: output, shape index: {}]
  %s11 = sld [smem:[#allocation0]]
  $region54: #{tpu_custom_call.1} parent=0
    _
  %s13 = ssub.s32 1, %s11
  %s14 = scalar_select 0, %s13, %s11
  $region1: #{tpu_custom_call.1} parent=0
    #allocation2 [shape = 'u8[4096]{0}', space=vmem, size = 0x1000, scoped, tag = 'input window, operand 1, single buffered']
    #allocation3 [shape = 's32[1]{0}', space=sflag, size = 0x4, scoped, tag = 'scoped memory for tpu_custom_call.1']
    #allocation4 [shape = 's32[1]{0}', space=sflag, size = 0x4, scoped, tag = 'scoped memory for tpu_custom_call.1']
    #allocation5 [shape = 'u8[4096]{0}', space=vmem, size = 0x1000, scoped, tag = 'output window, operand 0, single buffered']
    %15 = vsyncpa [#allocation3], 0
    %16 = vsyncpa [#allocation4], 0
    // Predicated region
    $region2: #{tpu_custom_call.1} parent=1 // pred_check
      _
    $region3: #{tpu_custom_call.1} parent=1 // pred_check_branch
      %18 = sbr.rel (0) target = $region5
    $region4: #{tpu_custom_call.1} parent=1 // pred_region
      _
    $region5: #{tpu_custom_call.1} parent=1 // pred_fallthru
      _
    // Predicated region
    $region6: #{tpu_custom_call.1} parent=1 // pred_check
      _
    $region7: #{tpu_custom_call.1} parent=1 // pred_check_branch
      %20 = sbr.rel (0) target = $region9
    $region8: #{tpu_custom_call.1} parent=1 // pred_region
      %s22 = ssub.s32 128, 128
      %23 = vsyncadd [#allocation3], %s22
      %s24 = sshll.u32 [#allocation2], 4
      %s25 = int_to_ptr.vmem [resolvable:$true] %s24
      %30 = dma.hbm_to_vmem [thread:$0]  %s1, 128, %s25, [#allocation3], 64, 64, 4
    $region9: #{tpu_custom_call.1} parent=1 // pred_fallthru
      _
    // Predicated region
    $region10: #{tpu_custom_call.1} parent=1 // pred_check
      _
    $region11: #{tpu_custom_call.1} parent=1 // pred_check_branch
      %32 = sbr.rel (0) target = $region13
    $region12: #{tpu_custom_call.1} parent=1 // pred_region
      _
    $region13: #{tpu_custom_call.1} parent=1 // pred_fallthru
      _
    // Predicated region
    $region14: #{tpu_custom_call.1} parent=1 // pred_check
      _
    $region15: #{tpu_custom_call.1} parent=1 // pred_check_branch
      %34 = sbr.rel (0) target = $region17
    $region16: #{tpu_custom_call.1} parent=1 // pred_region
      _
    $region17: #{tpu_custom_call.1} parent=1 // pred_fallthru
      _
    // Predicated region
    $region18: #{tpu_custom_call.1} parent=1 // pred_check
      _
    $region19: #{tpu_custom_call.1} parent=1 // pred_check_branch
      %36 = sbr.rel (0) target = $region21
    $region20: #{tpu_custom_call.1} parent=1 // pred_region
      _
    $region21: #{tpu_custom_call.1} parent=1 // pred_fallthru
      _
    // Predicated region
    $region22: #{tpu_custom_call.1} parent=1 // pred_check
      _
    $region23: #{tpu_custom_call.1} parent=1 // pred_check_branch
      %38 = sbr.rel (0) target = $region25
    $region24: #{tpu_custom_call.1} parent=1 // pred_region
      _
    $region25: #{tpu_custom_call.1} parent=1 // pred_fallthru
      _
    // Predicated region
    $region26: #{tpu_custom_call.1} parent=1 // pred_check
      _
    $region27: #{tpu_custom_call.1} parent=1 // pred_check_branch
      %40 = sbr.rel (0) target = $region29
    $region28: #{tpu_custom_call.1} parent=1 // pred_region
      _
    $region29: #{tpu_custom_call.1} parent=1 // pred_fallthru
      _
    // Predicated region
    $region30: #{tpu_custom_call.1} parent=1 // pred_check
      _
    $region31: #{tpu_custom_call.1} parent=1 // pred_check_branch
      %42 = sbr.rel (0) target = $region33
    $region32: #{tpu_custom_call.1} parent=1 // pred_region
      _
    $region33: #{tpu_custom_call.1} parent=1 // pred_fallthru
      _
    // Predicated region
    $region34: #{tpu_custom_call.1} parent=1 // pred_check
      _
    $region35: #{tpu_custom_call.1} parent=1 // pred_check_branch
      %44 = sbr.rel (0) target = $region37
    $region36: #{tpu_custom_call.1} parent=1 // pred_region
      _
    $region37: #{tpu_custom_call.1} parent=1 // pred_fallthru
      _
    // Predicated region
    $region38: #{tpu_custom_call.1} parent=1 // pred_check
      _
    $region39: #{tpu_custom_call.1} parent=1 // pred_check_branch
      %46 = sbr.rel (0) target = $region41
    $region40: #{tpu_custom_call.1} parent=1 // pred_region
      _
    $region41: #{tpu_custom_call.1} parent=1 // pred_fallthru
      _
    // Predicated region
    $region42: #{tpu_custom_call.1} parent=1 // pred_check
      _
    $region43: #{tpu_custom_call.1} parent=1 // pred_check_branch
      %48 = sbr.rel (0) target = $region45
    $region44: #{tpu_custom_call.1} parent=1 // pred_region
      %49 = dma.done [#allocation3], 128
    $region45: #{tpu_custom_call.1} parent=1 // pred_fallthru
      _
    %v50 = vld [vmem:[%s2] sm:$0xff]
    %v51 = vld [vmem:[%s3] sm:$0xff]
    %v52 = vld [vmem:[%s4] sm:$0xf]
    %v53 = vld [vmem:[%s5] sm:$0xf]
    %v54 = vld [vmem:[%s6] sm:$0xf]
    %v55 = vld [vmem:[%s7] sm:$0xf]
    %v56 = vld [vmem:[%s8] sm:$0xf]
    %v57 = vld [vmem:[%s9] sm:$0xf]
    %v58 = vlaneseq
    %v59 = vshrl.u32 %v58, 7
    %v60 = vlaneseq
    %v61 = vand.u32 %v60, 127
    %v62 = vmul.u32 %v59, 2
    %vm63 = vcmp.eq.s32.totalorder %v61, %v62
    %v64 = vsel %vm63, 1, 0
    %v65 = vcvt.s32.f32 %v64
    %v66 = vadd.s32 %v62, 1
    %vm67 = vcmp.eq.s32.totalorder %v61, %v66
    %v68 = vsel %vm67, 1, 0
    %v69 = vcvt.s32.f32 %v68
    %v70 = vld [vmem:[%s0] sm:$0xff]
    %v71 = vld [vmem:[#allocation2] sm:$0xf]
    %73 = vset.pattern.permute.xlu0 0
    %74 = vperm.xlu0 %73, %v51
    %v75 = vpop.permute.xlu0 %74
    %vm77 = vcmask 64512
    %v79 = vsel %vm77, %v50, 0
    %81 = vmatprep.subr.mxu0 0.0
    %82 = vmatpush1.msra.mxu0 %v70
    %83 = vmatprep.subr.mxu0 0.0
    %84 = vmatpush1.msra.mxu0 0.0
    %85 = vmatprep.subr.mxu0 0.0
    %86 = vmatpush1.msra.mxu0 0.0
    %87 = vmatprep.subr.mxu0 0.0
    %88 = vmatpush1.msra.mxu0 0.0
    %89 = vmatprep.subr.mxu0 0.0
    %90 = vmatpush1.msra.mxu0 0.0
    %91 = vmatprep.subr.mxu0 0.0
    %92 = vmatpush1.msra.mxu0 0.0
    %93 = vmatprep.subr.mxu0 0.0
    %94 = vmatpush1.msra.mxu0 0.0
    %95 = vmatprep.subr.mxu0 0.0
    %96 = vmatpush1.msra.mxu0 0.0
    %97 = vmatprep.subr.mxu0 0.0
    %98 = vmatpush1.msra.mxu0 0.0
    %99 = vmatprep.subr.mxu0 0.0
    %100 = vmatpush1.msra.mxu0 0.0
    %101 = vmatprep.subr.mxu0 0.0
    %102 = vmatpush1.msra.mxu0 0.0
    %103 = vmatprep.subr.mxu0 0.0
    %104 = vmatpush1.msra.mxu0 0.0
    %105 = vmatprep.subr.mxu0 0.0
    %106 = vmatpush1.msra.mxu0 0.0
    %107 = vmatprep.subr.mxu0 0.0
    %108 = vmatpush1.msra.mxu0 0.0
    %109 = vmatprep.subr.mxu0 0.0
    %110 = vmatpush1.msra.mxu0 0.0
    %111 = vmatprep.subr.mxu0 0.0
    %112 = vmatpush1.msra.mxu0 0.0
    %113 = vmatprep.subr.mxu0 0.0
    %114 = vmatpush1.msra.mxu0 0.0
    %115 = vmatprep.subr.mxu0 0.0
    %116 = vmatpush1.msra.mxu0 0.0
    %117 = vmatprep.subr.mxu0 0.0
    %118 = vmatpush1.msra.mxu0 0.0
    %119 = vmatprep.subr.mxu0 0.0
    %120 = vmatpush1.msra.mxu0 0.0
    %121 = vmatprep.subr.mxu0 0.0
    %122 = vmatpush1.msra.mxu0 0.0
    %123 = vmatprep.subr.mxu0 0.0
    %124 = vmatpush1.msra.mxu0 0.0
    %125 = vmatprep.subr.mxu0 0.0
    %126 = vmatpush1.msra.mxu0 0.0
    %127 = vmatprep.subr.mxu0 0.0
    %128 = vmatpush1.msra.mxu0 0.0
    %129 = vmatprep.subr.mxu0 0.0
    %130 = vmatpush1.msra.mxu0 0.0
    %131 = vmatprep.subr.mxu0 0.0
    %132 = vmatpush1.msra.mxu0 0.0
    %133 = vmatprep.subr.mxu0 0.0
    %134 = vmatpush1.msra.mxu0 0.0
    %135 = vmatprep.subr.mxu0 0.0
    %136 = vmatpush1.msra.mxu0 0.0
    %137 = vmatprep.subr.mxu0 0.0
    %138 = vmatpush1.msra.mxu0 0.0
    %139 = vmatprep.subr.mxu0 0.0
    %140 = vmatpush1.msra.mxu0 0.0
    %141 = vmatprep.subr.mxu0 0.0
    %142 = vmatpush1.msra.mxu0 0.0
    %143 = vmatprep.subr.mxu0 0.0
    %144 = vmatpush1.msra.mxu0 0.0
    %145 = vmatprep.mubr.f32.mxu0 0.0
    %146 = vmatmul.mubr.f32.gmra.mrb[0].mxu0 %v79
    %v147 = vpop.f32.mrb[0].mxu0
    %v148 = vadd.f32 %v75, %v147
    %v149 = vpop.f32.mrb[0].mxu0
    %150 = vdwg.mxu0
    %v152 = vrot.slane %v148, 4
    %v153 = vsel %vm77, %v152, 0
    %155 = vmatprep.subr.mxu0 0.0
    %156 = vmatpush1.msra.mxu0 %v69
    %157 = vmatprep.subr.mxu0 0.0
    %158 = vmatpush1.msra.mxu0 0.0
    %159 = vmatprep.subr.mxu0 0.0
    %160 = vmatpush1.msra.mxu0 0.0
    %161 = vmatprep.subr.mxu0 0.0
    %162 = vmatpush1.msra.mxu0 0.0
    %163 = vmatprep.subr.mxu0 0.0
    %164 = vmatpush1.msra.mxu0 0.0
    %165 = vmatprep.subr.mxu0 0.0
    %166 = vmatpush1.msra.mxu0 0.0
    %167 = vmatprep.subr.mxu0 0.0
    %168 = vmatpush1.msra.mxu0 0.0
    %169 = vmatprep.subr.mxu0 0.0
    %170 = vmatpush1.msra.mxu0 0.0
    %171 = vmatprep.subr.mxu0 0.0
    %172 = vmatpush1.msra.mxu0 0.0
    %173 = vmatprep.subr.mxu0 0.0
    %174 = vmatpush1.msra.mxu0 0.0
    %175 = vmatprep.subr.mxu0 0.0
    %176 = vmatpush1.msra.mxu0 0.0
    %177 = vmatprep.subr.mxu0 0.0
    %178 = vmatpush1.msra.mxu0 0.0
    %179 = vmatprep.subr.mxu0 0.0
    %180 = vmatpush1.msra.mxu0 0.0
    %181 = vmatprep.subr.mxu0 0.0
    %182 = vmatpush1.msra.mxu0 0.0
    %183 = vmatprep.subr.mxu0 0.0
    %184 = vmatpush1.msra.mxu0 0.0
    %185 = vmatprep.subr.mxu0 0.0
    %186 = vmatpush1.msra.mxu0 0.0
    %187 = vmatprep.subr.mxu0 0.0
    %188 = vmatpush1.msra.mxu0 0.0
    %189 = vmatprep.subr.mxu0 0.0
    %190 = vmatpush1.msra.mxu0 0.0
    %191 = vmatprep.subr.mxu0 0.0
    %192 = vmatpush1.msra.mxu0 0.0
    %193 = vmatprep.subr.mxu0 0.0
    %194 = vmatpush1.msra.mxu0 0.0
    %195 = vmatprep.subr.mxu0 0.0
    %196 = vmatpush1.msra.mxu0 0.0
    %197 = vmatprep.subr.mxu0 0.0
    %198 = vmatpush1.msra.mxu0 0.0
    %199 = vmatprep.subr.mxu0 0.0
    %200 = vmatpush1.msra.mxu0 0.0
    %201 = vmatprep.subr.mxu0 0.0
    %202 = vmatpush1.msra.mxu0 0.0
    %203 = vmatprep.subr.mxu0 0.0
    %204 = vmatpush1.msra.mxu0 0.0
    %205 = vmatprep.subr.mxu0 0.0
    %206 = vmatpush1.msra.mxu0 0.0
    %207 = vmatprep.subr.mxu0 0.0
    %208 = vmatpush1.msra.mxu0 0.0
    %209 = vmatprep.subr.mxu0 0.0
    %210 = vmatpush1.msra.mxu0 0.0
    %211 = vmatprep.subr.mxu0 0.0
    %212 = vmatpush1.msra.mxu0 0.0
    %213 = vmatprep.subr.mxu0 0.0
    %214 = vmatpush1.msra.mxu0 0.0
    %215 = vmatprep.subr.mxu0 0.0
    %216 = vmatpush1.msra.mxu0 0.0
    %217 = vmatprep.subr.mxu0 0.0
    %218 = vmatpush1.msra.mxu0 0.0
    %219 = vmatprep.mubr.f32.mxu0 0.0
    %220 = vmatmul.mubr.f32.gmra.mrb[0].mxu0 %v153
    %v221 = vpop.f32.mrb[0].mxu0
    %v222 = vadd.f32 0.0, %v221
    %v223 = vpop.f32.mrb[0].mxu0
    %224 = vdwg.mxu0
    %v225 = vsel %vm77, %v148, 0
    %227 = vmatprep.subr.mxu0 0.0
    %228 = vmatpush1.msra.mxu0 %v65
    %229 = vmatprep.subr.mxu0 0.0
    %230 = vmatpush1.msra.mxu0 0.0
    %231 = vmatprep.subr.mxu0 0.0
    %232 = vmatpush1.msra.mxu0 0.0
    %233 = vmatprep.subr.mxu0 0.0
    %234 = vmatpush1.msra.mxu0 0.0
    %235 = vmatprep.subr.mxu0 0.0
    %236 = vmatpush1.msra.mxu0 0.0
    %237 = vmatprep.subr.mxu0 0.0
    %238 = vmatpush1.msra.mxu0 0.0
    %239 = vmatprep.subr.mxu0 0.0
    %240 = vmatpush1.msra.mxu0 0.0
    %241 = vmatprep.subr.mxu0 0.0
    %242 = vmatpush1.msra.mxu0 0.0
    %243 = vmatprep.subr.mxu0 0.0
    %244 = vmatpush1.msra.mxu0 0.0
    %245 = vmatprep.subr.mxu0 0.0
    %246 = vmatpush1.msra.mxu0 0.0
    %247 = vmatprep.subr.mxu0 0.0
    %248 = vmatpush1.msra.mxu0 0.0
    %249 = vmatprep.subr.mxu0 0.0
    %250 = vmatpush1.msra.mxu0 0.0
    %251 = vmatprep.subr.mxu0 0.0
    %252 = vmatpush1.msra.mxu0 0.0
    %253 = vmatprep.subr.mxu0 0.0
    %254 = vmatpush1.msra.mxu0 0.0
    %255 = vmatprep.subr.mxu0 0.0
    %256 = vmatpush1.msra.mxu0 0.0
    %257 = vmatprep.subr.mxu0 0.0
    %258 = vmatpush1.msra.mxu0 0.0
    %259 = vmatprep.subr.mxu0 0.0
    %260 = vmatpush1.msra.mxu0 0.0
    %261 = vmatprep.subr.mxu0 0.0
    %262 = vmatpush1.msra.mxu0 0.0
    %263 = vmatprep.subr.mxu0 0.0
    %264 = vmatpush1.msra.mxu0 0.0
    %265 = vmatprep.subr.mxu0 0.0
    %266 = vmatpush1.msra.mxu0 0.0
    %267 = vmatprep.subr.mxu0 0.0
    %268 = vmatpush1.msra.mxu0 0.0
    %269 = vmatprep.subr.mxu0 0.0
    %270 = vmatpush1.msra.mxu0 0.0
    %271 = vmatprep.subr.mxu0 0.0
    %272 = vmatpush1.msra.mxu0 0.0
    %273 = vmatprep.subr.mxu0 0.0
    %274 = vmatpush1.msra.mxu0 0.0
    %275 = vmatprep.subr.mxu0 0.0
    %276 = vmatpush1.msra.mxu0 0.0
    %277 = vmatprep.subr.mxu0 0.0
    %278 = vmatpush1.msra.mxu0 0.0
    %279 = vmatprep.subr.mxu0 0.0
    %280 = vmatpush1.msra.mxu0 0.0
    %281 = vmatprep.subr.mxu0 0.0
    %282 = vmatpush1.msra.mxu0 0.0
    %283 = vmatprep.subr.mxu0 0.0
    %284 = vmatpush1.msra.mxu0 0.0
    %285 = vmatprep.subr.mxu0 0.0
    %286 = vmatpush1.msra.mxu0 0.0
    %287 = vmatprep.subr.mxu0 0.0
    %288 = vmatpush1.msra.mxu0 0.0
    %289 = vmatprep.subr.mxu0 0.0
    %290 = vmatpush1.msra.mxu0 0.0
    %291 = vmatprep.mubr.f32.mxu0 0.0
    %292 = vmatmul.mubr.f32.gmra.mrb[0].mxu0 %v225
    %v293 = vpop.f32.mrb[0].mxu0
    %v294 = vadd.f32 %v222, %v293
    %v295 = vpop.f32.mrb[0].mxu0
    %296 = vdwg.mxu0
    %v298 = vrot.slane %v294, 4
    %vm300 = vcmask 1043456
    %v301 = vsel %vm300, %v71, %v298
    %303 = vrot.lane.b32.xlu0 %v301, 3
    %v304 = vpop.permute.xlu0 %303
    %vm306 = vcmask 23552
    %v307 = vsel %vm306, 0.0, %v304
    %vm308 = vcmask 154624
    %v309 = vsel %vm308, %v307, 0.0
    %311 = vrot.lane.b32.xlu0 %v309, 127
    %v312 = vpop.permute.xlu0 %311
    %314 = vrot.lane.b32.xlu0 %v309, 126
    %v315 = vpop.permute.xlu0 %314
    %317 = vrot.lane.b32.xlu0 %v309, 125
    %v318 = vpop.permute.xlu0 %317
    %320 = vrot.lane.b32.xlu0 %v309, 124
    %v321 = vpop.permute.xlu0 %320
    %323 = vrot.lane.b32.xlu0 %v309, 123
    %v324 = vpop.permute.xlu0 %323
    %326 = vrot.lane.b32.xlu0 %v309, 122
    %v327 = vpop.permute.xlu0 %326
    %330 = vset.pattern.permute.xlu0 0
    %331 = vperm.xlu0 %330, %v53
    %v332 = vpop.permute.xlu0 %331
    %vm334 = vcmask 457728
    %v336 = vsel %vm334, %v52, 0
    %338 = vmatprep.subr.mxu0 0.0
    %339 = vmatpush1.msra.mxu0 %v309
    %340 = vmatprep.subr.mxu0 0.0
    %341 = vmatpush1.msra.mxu0 %v312
    %342 = vmatprep.subr.mxu0 0.0
    %343 = vmatpush1.msra.mxu0 %v315
    %344 = vmatprep.subr.mxu0 0.0
    %345 = vmatpush1.msra.mxu0 %v318
    %346 = vmatprep.subr.mxu0 0.0
    %347 = vmatpush1.msra.mxu0 %v321
    %348 = vmatprep.subr.mxu0 0.0
    %349 = vmatpush1.msra.mxu0 %v324
    %350 = vmatprep.subr.mxu0 0.0
    %351 = vmatpush1.msra.mxu0 %v327
    %352 = vmatprep.subr.mxu0 0.0
    %353 = vmatpush1.msra.mxu0 0.0
    %354 = vmatprep.subr.mxu0 0.0
    %355 = vmatpush1.msra.mxu0 0.0
    %356 = vmatprep.subr.mxu0 0.0
    %357 = vmatpush1.msra.mxu0 0.0
    %358 = vmatprep.subr.mxu0 0.0
    %359 = vmatpush1.msra.mxu0 0.0
    %360 = vmatprep.subr.mxu0 0.0
    %361 = vmatpush1.msra.mxu0 0.0
    %362 = vmatprep.subr.mxu0 0.0
    %363 = vmatpush1.msra.mxu0 0.0
    %364 = vmatprep.subr.mxu0 0.0
    %365 = vmatpush1.msra.mxu0 0.0
    %366 = vmatprep.subr.mxu0 0.0
    %367 = vmatpush1.msra.mxu0 0.0
    %368 = vmatprep.subr.mxu0 0.0
    %369 = vmatpush1.msra.mxu0 0.0
    %370 = vmatprep.subr.mxu0 0.0
    %371 = vmatpush1.msra.mxu0 0.0
    %372 = vmatprep.subr.mxu0 0.0
    %373 = vmatpush1.msra.mxu0 0.0
    %374 = vmatprep.subr.mxu0 0.0
    %375 = vmatpush1.msra.mxu0 0.0
    %376 = vmatprep.subr.mxu0 0.0
    %377 = vmatpush1.msra.mxu0 0.0
    %378 = vmatprep.subr.mxu0 0.0
    %379 = vmatpush1.msra.mxu0 0.0
    %380 = vmatprep.subr.mxu0 0.0
    %381 = vmatpush1.msra.mxu0 0.0
    %382 = vmatprep.subr.mxu0 0.0
    %383 = vmatpush1.msra.mxu0 0.0
    %384 = vmatprep.subr.mxu0 0.0
    %385 = vmatpush1.msra.mxu0 0.0
    %386 = vmatprep.subr.mxu0 0.0
    %387 = vmatpush1.msra.mxu0 0.0
    %388 = vmatprep.subr.mxu0 0.0
    %389 = vmatpush1.msra.mxu0 0.0
    %390 = vmatprep.subr.mxu0 0.0
    %391 = vmatpush1.msra.mxu0 0.0
    %392 = vmatprep.subr.mxu0 0.0
    %393 = vmatpush1.msra.mxu0 0.0
    %394 = vmatprep.subr.mxu0 0.0
    %395 = vmatpush1.msra.mxu0 0.0
    %396 = vmatprep.subr.mxu0 0.0
    %397 = vmatpush1.msra.mxu0 0.0
    %398 = vmatprep.subr.mxu0 0.0
    %399 = vmatpush1.msra.mxu0 0.0
    %400 = vmatprep.subr.mxu0 0.0
    %401 = vmatpush1.msra.mxu0 0.0
    %402 = vmatprep.mubr.f32.mxu0 0.0
    %403 = vmatmul.mubr.f32.gmra.mrb[0].mxu0 %v336
    %v404 = vpop.f32.mrb[0].mxu0
    %v405 = vadd.f32 %v332, %v404
    %v406 = vpop.f32.mrb[0].mxu0
    %407 = vdwg.mxu0
    %vm408 = vcmask 125952
    %v409 = vsel %vm408, %v405, 0.0
    %410 = vadd.xlane.f32.xlu0 %v409
    %v411 = vpop.xlane.xlu0 %410
    %v412 = vsel %vm300, %v411, 0.0
    %v413 = vrot.slane %v412, 4
    %v414 = vadd.f32 %v412, %v413
    %v415 = vrot.slane %v414, 2
    %v416 = vadd.f32 %v414, %v415
    %v417 = vrot.slane %v416, 1
    %v418 = vadd.f32 %v416, %v417
    %v419 = vmul.f32 %v418, 0.015625
    %v420 = vsub.f32 %v405, %v419
    %v421 = vmul.f32 %v420, %v420
    %v422 = vsel %vm408, %v421, 0.0
    %423 = vadd.xlane.f32.xlu0 %v422
    %v424 = vpop.xlane.xlu0 %423
    %v425 = vsel %vm300, %v424, 0.0
    %v426 = vrot.slane %v425, 4
    %v427 = vadd.f32 %v425, %v426
    %v428 = vrot.slane %v427, 2
    %v429 = vadd.f32 %v427, %v428
    %v430 = vrot.slane %v429, 1
    %v431 = vadd.f32 %v429, %v430
    %v432 = vmul.f32 %v431, 0.015625
    %v433 = vadd.f32 %v432, 1e-05
    %v434 = vrsqrt.pop %v433
    %v435 = vmul.f32 %v420, %v434
    %v436 = vmul.f32 %v435, %v54
    %v437 = vadd.f32 %v436, %v55
    %439 = vrot.lane.b32.xlu0 %v437, 3
    %v440 = vpop.permute.xlu0 %439
    %v442 = vsel %vm306, 0.0, %v440
    %v443 = vsel %vm308, %v442, 0.0
    %v445 = vrot.slane %v443, 4
    %446 = vrot.lane.b32.xlu0 %v445, 127
    %v447 = vpop.permute.xlu0 %446
    %449 = vrot.lane.b32.xlu0 %v443, 126
    %v450 = vpop.permute.xlu0 %449
    %452 = vrot.lane.b32.xlu0 %v445, 125
    %v453 = vpop.permute.xlu0 %452
    %455 = vrot.lane.b32.xlu0 %v443, 124
    %v456 = vpop.permute.xlu0 %455
    %458 = vrot.lane.b32.xlu0 %v445, 123
    %v459 = vpop.permute.xlu0 %458
    %461 = vrot.lane.b32.xlu0 %v443, 122
    %v462 = vpop.permute.xlu0 %461
    %v463 = vsel %vm300, %v443, %v447
    %v464 = vsel %vm300, %v450, %v453
    %v465 = vsel %vm300, %v456, %v459
    %467 = vset.pattern.permute.xlu0 0
    %468 = vperm.xlu0 %467, %v57
    %v469 = vpop.permute.xlu0 %468
    %vm471 = vcmask 228352
    %v473 = vsel %vm471, %v56, 0
    %v475 = vsel %vm300, %v462, 0
    %477 = vmatprep.subr.mxu0 0.0
    %478 = vmatpush1.msra.mxu0 %v463
    %479 = vmatprep.subr.mxu0 0.0
    %480 = vmatpush1.msra.mxu0 %v464
    %481 = vmatprep.subr.mxu0 0.0
    %482 = vmatpush1.msra.mxu0 %v465
    %483 = vmatprep.subr.mxu0 0.0
    %484 = vmatpush1.msra.mxu0 %v475
    %485 = vmatprep.subr.mxu0 0.0
    %486 = vmatpush1.msra.mxu0 0.0
    %487 = vmatprep.subr.mxu0 0.0
    %488 = vmatpush1.msra.mxu0 0.0
    %489 = vmatprep.subr.mxu0 0.0
    %490 = vmatpush1.msra.mxu0 0.0
    %491 = vmatprep.subr.mxu0 0.0
    %492 = vmatpush1.msra.mxu0 0.0
    %493 = vmatprep.subr.mxu0 0.0
    %494 = vmatpush1.msra.mxu0 0.0
    %495 = vmatprep.subr.mxu0 0.0
    %496 = vmatpush1.msra.mxu0 0.0
    %497 = vmatprep.subr.mxu0 0.0
    %498 = vmatpush1.msra.mxu0 0.0
    %499 = vmatprep.subr.mxu0 0.0
    %500 = vmatpush1.msra.mxu0 0.0
    %501 = vmatprep.subr.mxu0 0.0
    %502 = vmatpush1.msra.mxu0 0.0
    %503 = vmatprep.subr.mxu0 0.0
    %504 = vmatpush1.msra.mxu0 0.0
    %505 = vmatprep.subr.mxu0 0.0
    %506 = vmatpush1.msra.mxu0 0.0
    %507 = vmatprep.subr.mxu0 0.0
    %508 = vmatpush1.msra.mxu0 0.0
    %509 = vmatprep.subr.mxu0 0.0
    %510 = vmatpush1.msra.mxu0 0.0
    %511 = vmatprep.subr.mxu0 0.0
    %512 = vmatpush1.msra.mxu0 0.0
    %513 = vmatprep.subr.mxu0 0.0
    %514 = vmatpush1.msra.mxu0 0.0
    %515 = vmatprep.subr.mxu0 0.0
    %516 = vmatpush1.msra.mxu0 0.0
    %517 = vmatprep.subr.mxu0 0.0
    %518 = vmatpush1.msra.mxu0 0.0
    %519 = vmatprep.subr.mxu0 0.0
    %520 = vmatpush1.msra.mxu0 0.0
    %521 = vmatprep.subr.mxu0 0.0
    %522 = vmatpush1.msra.mxu0 0.0
    %523 = vmatprep.subr.mxu0 0.0
    %524 = vmatpush1.msra.mxu0 0.0
    %525 = vmatprep.subr.mxu0 0.0
    %526 = vmatpush1.msra.mxu0 0.0
    %527 = vmatprep.subr.mxu0 0.0
    %528 = vmatpush1.msra.mxu0 0.0
    %529 = vmatprep.subr.mxu0 0.0
    %530 = vmatpush1.msra.mxu0 0.0
    %531 = vmatprep.subr.mxu0 0.0
    %532 = vmatpush1.msra.mxu0 0.0
    %533 = vmatprep.subr.mxu0 0.0
    %534 = vmatpush1.msra.mxu0 0.0
    %535 = vmatprep.subr.mxu0 0.0
    %536 = vmatpush1.msra.mxu0 0.0
    %537 = vmatprep.subr.mxu0 0.0
    %538 = vmatpush1.msra.mxu0 0.0
    %539 = vmatprep.subr.mxu0 0.0
    %540 = vmatpush1.msra.mxu0 0.0
    %541 = vmatprep.mubr.f32.mxu0 0.0
    %542 = vmatmul.mubr.f32.gmra.mrb[0].mxu0 %v473
    %v543 = vpop.f32.mrb[0].mxu0
    %v544 = vadd.f32 %v469, %v543
    %v545 = vpop.f32.mrb[0].mxu0
    %546 = vdwg.mxu0
    %v547 = vmul.f32 %v544, 0.5
    %v548 = vmul.f32 %v544, 0.70710677
    %v549 = vand.u32 2147483647, %v548
    %v550 = vmul.f32 %v549, 0.3275911
    %v551 = vadd.f32 %v550, 1.0
    %v552 = vrcp.pop %v551
    %v553 = vmul.f32 1.0, %v552
    %v554 = vmul.f32 %v553, 1.0614054
    %v555 = vadd.f32 %v554, -1.4531521
    %v556 = vmul.f32 %v555, %v553
    %v557 = vadd.f32 %v556, 1.4214138
    %v558 = vmul.f32 %v557, %v553
    %v559 = vadd.f32 %v558, -0.28449672
    %v560 = vmul.f32 %v559, %v553
    %v561 = vadd.f32 %v560, 0.2548296
    %v562 = vmul.f32 %v561, %v553
    %v563 = vsub.f32 0.0, %v549
    %v564 = vmul.f32 %v563, %v549
    %v565 = vmul.f32 %v564, 1.442695
    %v566 = vpow.pop %v565
    %v567 = vmul.f32 %v562, %v566
    %v568 = vsub.f32 1.0, %v567
    %vm569 = vcmp.ge.f32.partialorder %v548, 0.0
    %v570 = vsub.f32 0.0, %v568
    %v571 = vsel %vm569, %v568, %v570
    %v572 = vadd.f32 %v571, 1.0
    %v573 = vmul.f32 %v547, %v572
    %s574 = scalar_lea.vmem %s0, 8
    %v575 = vld [vmem:[%s574] sm:$0xff]
    %s576 = scalar_lea.vmem [#allocation2], 4
    %v577 = vld [vmem:[%s576] sm:$0xf]
    %578 = vmatprep.subr.mxu0 0.0
    %579 = vmatpush1.msra.mxu0 %v575
    %580 = vmatprep.subr.mxu0 0.0
    %581 = vmatpush1.msra.mxu0 0.0
    %582 = vmatprep.subr.mxu0 0.0
    %583 = vmatpush1.msra.mxu0 0.0
    %584 = vmatprep.subr.mxu0 0.0
    %585 = vmatpush1.msra.mxu0 0.0
    %586 = vmatprep.subr.mxu0 0.0
    %587 = vmatpush1.msra.mxu0 0.0
    %588 = vmatprep.subr.mxu0 0.0
    %589 = vmatpush1.msra.mxu0 0.0
    %590 = vmatprep.subr.mxu0 0.0
    %591 = vmatpush1.msra.mxu0 0.0
    %592 = vmatprep.subr.mxu0 0.0
    %593 = vmatpush1.msra.mxu0 0.0
    %594 = vmatprep.subr.mxu0 0.0
    %595 = vmatpush1.msra.mxu0 0.0
    %596 = vmatprep.subr.mxu0 0.0
    %597 = vmatpush1.msra.mxu0 0.0
    %598 = vmatprep.subr.mxu0 0.0
    %599 = vmatpush1.msra.mxu0 0.0
    %600 = vmatprep.subr.mxu0 0.0
    %601 = vmatpush1.msra.mxu0 0.0
    %602 = vmatprep.subr.mxu0 0.0
    %603 = vmatpush1.msra.mxu0 0.0
    %604 = vmatprep.subr.mxu0 0.0
    %605 = vmatpush1.msra.mxu0 0.0
    %606 = vmatprep.subr.mxu0 0.0
    %607 = vmatpush1.msra.mxu0 0.0
    %608 = vmatprep.subr.mxu0 0.0
    %609 = vmatpush1.msra.mxu0 0.0
    %610 = vmatprep.subr.mxu0 0.0
    %611 = vmatpush1.msra.mxu0 0.0
    %612 = vmatprep.subr.mxu0 0.0
    %613 = vmatpush1.msra.mxu0 0.0
    %614 = vmatprep.subr.mxu0 0.0
    %615 = vmatpush1.msra.mxu0 0.0
    %616 = vmatprep.subr.mxu0 0.0
    %617 = vmatpush1.msra.mxu0 0.0
    %618 = vmatprep.subr.mxu0 0.0
    %619 = vmatpush1.msra.mxu0 0.0
    %620 = vmatprep.subr.mxu0 0.0
    %621 = vmatpush1.msra.mxu0 0.0
    %622 = vmatprep.subr.mxu0 0.0
    %623 = vmatpush1.msra.mxu0 0.0
    %624 = vmatprep.subr.mxu0 0.0
    %625 = vmatpush1.msra.mxu0 0.0
    %626 = vmatprep.subr.mxu0 0.0
    %627 = vmatpush1.msra.mxu0 0.0
    %628 = vmatprep.subr.mxu0 0.0
    %629 = vmatpush1.msra.mxu0 0.0
    %630 = vmatprep.subr.mxu0 0.0
    %631 = vmatpush1.msra.mxu0 0.0
    %632 = vmatprep.subr.mxu0 0.0
    %633 = vmatpush1.msra.mxu0 0.0
    %634 = vmatprep.subr.mxu0 0.0
    %635 = vmatpush1.msra.mxu0 0.0
    %636 = vmatprep.subr.mxu0 0.0
    %637 = vmatpush1.msra.mxu0 0.0
    %638 = vmatprep.subr.mxu0 0.0
    %639 = vmatpush1.msra.mxu0 0.0
    %640 = vmatprep.subr.mxu0 0.0
    %641 = vmatpush1.msra.mxu0 0.0
    %642 = vmatprep.mubr.f32.mxu0 0.0
    %643 = vmatmul.mubr.f32.gmra.mrb[0].mxu0 %v79
    %v644 = vpop.f32.mrb[0].mxu0
    %v645 = vadd.f32 %v75, %v644
    %v646 = vpop.f32.mrb[0].mxu0
    %647 = vdwg.mxu0
    %v649 = vrot.slane %v645, 4
    %v650 = vsel %vm77, %v649, 0
    %652 = vmatprep.subr.mxu0 0.0
    %653 = vmatpush1.msra.mxu0 %v69
    %654 = vmatprep.subr.mxu0 0.0
    %655 = vmatpush1.msra.mxu0 0.0
    %656 = vmatprep.subr.mxu0 0.0
    %657 = vmatpush1.msra.mxu0 0.0
    %658 = vmatprep.subr.mxu0 0.0
    %659 = vmatpush1.msra.mxu0 0.0
    %660 = vmatprep.subr.mxu0 0.0
    %661 = vmatpush1.msra.mxu0 0.0
    %662 = vmatprep.subr.mxu0 0.0
    %663 = vmatpush1.msra.mxu0 0.0
    %664 = vmatprep.subr.mxu0 0.0
    %665 = vmatpush1.msra.mxu0 0.0
    %666 = vmatprep.subr.mxu0 0.0
    %667 = vmatpush1.msra.mxu0 0.0
    %668 = vmatprep.subr.mxu0 0.0
    %669 = vmatpush1.msra.mxu0 0.0
    %670 = vmatprep.subr.mxu0 0.0
    %671 = vmatpush1.msra.mxu0 0.0
    %672 = vmatprep.subr.mxu0 0.0
    %673 = vmatpush1.msra.mxu0 0.0
    %674 = vmatprep.subr.mxu0 0.0
    %675 = vmatpush1.msra.mxu0 0.0
    %676 = vmatprep.subr.mxu0 0.0
    %677 = vmatpush1.msra.mxu0 0.0
    %678 = vmatprep.subr.mxu0 0.0
    %679 = vmatpush1.msra.mxu0 0.0
    %680 = vmatprep.subr.mxu0 0.0
    %681 = vmatpush1.msra.mxu0 0.0
    %682 = vmatprep.subr.mxu0 0.0
    %683 = vmatpush1.msra.mxu0 0.0
    %684 = vmatprep.subr.mxu0 0.0
    %685 = vmatpush1.msra.mxu0 0.0
    %686 = vmatprep.subr.mxu0 0.0
    %687 = vmatpush1.msra.mxu0 0.0
    %688 = vmatprep.subr.mxu0 0.0
    %689 = vmatpush1.msra.mxu0 0.0
    %690 = vmatprep.subr.mxu0 0.0
    %691 = vmatpush1.msra.mxu0 0.0
    %692 = vmatprep.subr.mxu0 0.0
    %693 = vmatpush1.msra.mxu0 0.0
    %694 = vmatprep.subr.mxu0 0.0
    %695 = vmatpush1.msra.mxu0 0.0
    %696 = vmatprep.subr.mxu0 0.0
    %697 = vmatpush1.msra.mxu0 0.0
    %698 = vmatprep.subr.mxu0 0.0
    %699 = vmatpush1.msra.mxu0 0.0
    %700 = vmatprep.subr.mxu0 0.0
    %701 = vmatpush1.msra.mxu0 0.0
    %702 = vmatprep.subr.mxu0 0.0
    %703 = vmatpush1.msra.mxu0 0.0
    %704 = vmatprep.subr.mxu0 0.0
    %705 = vmatpush1.msra.mxu0 0.0
    %706 = vmatprep.subr.mxu0 0.0
    %707 = vmatpush1.msra.mxu0 0.0
    %708 = vmatprep.subr.mxu0 0.0
    %709 = vmatpush1.msra.mxu0 0.0
    %710 = vmatprep.subr.mxu0 0.0
    %711 = vmatpush1.msra.mxu0 0.0
    %712 = vmatprep.subr.mxu0 0.0
    %713 = vmatpush1.msra.mxu0 0.0
    %714 = vmatprep.subr.mxu0 0.0
    %715 = vmatpush1.msra.mxu0 0.0
    %716 = vmatprep.mubr.f32.mxu0 0.0
    %717 = vmatmul.mubr.f32.gmra.mrb[0].mxu0 %v650
    %v718 = vpop.f32.mrb[0].mxu0
    %v719 = vadd.f32 0.0, %v718
    %v720 = vpop.f32.mrb[0].mxu0
    %721 = vdwg.mxu0
    %v722 = vsel %vm77, %v645, 0
    %724 = vmatprep.subr.mxu0 0.0
    %725 = vmatpush1.msra.mxu0 %v65
    %726 = vmatprep.subr.mxu0 0.0
    %727 = vmatpush1.msra.mxu0 0.0
    %728 = vmatprep.subr.mxu0 0.0
    %729 = vmatpush1.msra.mxu0 0.0
    %730 = vmatprep.subr.mxu0 0.0
    %731 = vmatpush1.msra.mxu0 0.0
    %732 = vmatprep.subr.mxu0 0.0
    %733 = vmatpush1.msra.mxu0 0.0
    %734 = vmatprep.subr.mxu0 0.0
    %735 = vmatpush1.msra.mxu0 0.0
    %736 = vmatprep.subr.mxu0 0.0
    %737 = vmatpush1.msra.mxu0 0.0
    %738 = vmatprep.subr.mxu0 0.0
    %739 = vmatpush1.msra.mxu0 0.0
    %740 = vmatprep.subr.mxu0 0.0
    %741 = vmatpush1.msra.mxu0 0.0
    %742 = vmatprep.subr.mxu0 0.0
    %743 = vmatpush1.msra.mxu0 0.0
    %744 = vmatprep.subr.mxu0 0.0
    %745 = vmatpush1.msra.mxu0 0.0
    %746 = vmatprep.subr.mxu0 0.0
    %747 = vmatpush1.msra.mxu0 0.0
    %748 = vmatprep.subr.mxu0 0.0
    %749 = vmatpush1.msra.mxu0 0.0
    %750 = vmatprep.subr.mxu0 0.0
    %751 = vmatpush1.msra.mxu0 0.0
    %752 = vmatprep.subr.mxu0 0.0
    %753 = vmatpush1.msra.mxu0 0.0
    %754 = vmatprep.subr.mxu0 0.0
    %755 = vmatpush1.msra.mxu0 0.0
    %756 = vmatprep.subr.mxu0 0.0
    %757 = vmatpush1.msra.mxu0 0.0
    %758 = vmatprep.subr.mxu0 0.0
    %759 = vmatpush1.msra.mxu0 0.0
    %760 = vmatprep.subr.mxu0 0.0
    %761 = vmatpush1.msra.mxu0 0.0
    %762 = vmatprep.subr.mxu0 0.0
    %763 = vmatpush1.msra.mxu0 0.0
    %764 = vmatprep.subr.mxu0 0.0
    %765 = vmatpush1.msra.mxu0 0.0
    %766 = vmatprep.subr.mxu0 0.0
    %767 = vmatpush1.msra.mxu0 0.0
    %768 = vmatprep.subr.mxu0 0.0
    %769 = vmatpush1.msra.mxu0 0.0
    %770 = vmatprep.subr.mxu0 0.0
    %771 = vmatpush1.msra.mxu0 0.0
    %772 = vmatprep.subr.mxu0 0.0
    %773 = vmatpush1.msra.mxu0 0.0
    %774 = vmatprep.subr.mxu0 0.0
    %775 = vmatpush1.msra.mxu0 0.0
    %776 = vmatprep.subr.mxu0 0.0
    %777 = vmatpush1.msra.mxu0 0.0
    %778 = vmatprep.subr.mxu0 0.0
    %779 = vmatpush1.msra.mxu0 0.0
    %780 = vmatprep.subr.mxu0 0.0
    %781 = vmatpush1.msra.mxu0 0.0
    %782 = vmatprep.subr.mxu0 0.0
    %783 = vmatpush1.msra.mxu0 0.0
    %784 = vmatprep.subr.mxu0 0.0
    %785 = vmatpush1.msra.mxu0 0.0
    %786 = vmatprep.subr.mxu0 0.0
    %787 = vmatpush1.msra.mxu0 0.0
    %788 = vmatprep.mubr.f32.mxu0 0.0
    %789 = vmatmul.mubr.f32.gmra.mrb[0].mxu0 %v722
    %v790 = vpop.f32.mrb[0].mxu0
    %v791 = vadd.f32 %v719, %v790
    %v792 = vpop.f32.mrb[0].mxu0
    %793 = vdwg.mxu0
    %v795 = vrot.slane %v791, 4
    %v797 = vsel %vm300, %v577, %v795
    %799 = vrot.lane.b32.xlu0 %v797, 3
    %v800 = vpop.permute.xlu0 %799
    %v802 = vsel %vm306, 0.0, %v800
    %v803 = vsel %vm308, %v802, 0.0
    %805 = vrot.lane.b32.xlu0 %v803, 127
    %v806 = vpop.permute.xlu0 %805
    %808 = vrot.lane.b32.xlu0 %v803, 126
    %v809 = vpop.permute.xlu0 %808
    %811 = vrot.lane.b32.xlu0 %v803, 125
    %v812 = vpop.permute.xlu0 %811
    %814 = vrot.lane.b32.xlu0 %v803, 124
    %v815 = vpop.permute.xlu0 %814
    %817 = vrot.lane.b32.xlu0 %v803, 123
    %v818 = vpop.permute.xlu0 %817
    %820 = vrot.lane.b32.xlu0 %v803, 122
    %v821 = vpop.permute.xlu0 %820
    %823 = vmatprep.subr.mxu0 0.0
    %824 = vmatpush1.msra.mxu0 %v803
    %825 = vmatprep.subr.mxu0 0.0
    %826 = vmatpush1.msra.mxu0 %v806
    %827 = vmatprep.subr.mxu0 0.0
    %828 = vmatpush1.msra.mxu0 %v809
    %829 = vmatprep.subr.mxu0 0.0
    %830 = vmatpush1.msra.mxu0 %v812
    %831 = vmatprep.subr.mxu0 0.0
    %832 = vmatpush1.msra.mxu0 %v815
    %833 = vmatprep.subr.mxu0 0.0
    %834 = vmatpush1.msra.mxu0 %v818
    %835 = vmatprep.subr.mxu0 0.0
    %836 = vmatpush1.msra.mxu0 %v821
    %837 = vmatprep.subr.mxu0 0.0
    %838 = vmatpush1.msra.mxu0 0.0
    %839 = vmatprep.subr.mxu0 0.0
    %840 = vmatpush1.msra.mxu0 0.0
    %841 = vmatprep.subr.mxu0 0.0
    %842 = vmatpush1.msra.mxu0 0.0
    %843 = vmatprep.subr.mxu0 0.0
    %844 = vmatpush1.msra.mxu0 0.0
    %845 = vmatprep.subr.mxu0 0.0
    %846 = vmatpush1.msra.mxu0 0.0
    %847 = vmatprep.subr.mxu0 0.0
    %848 = vmatpush1.msra.mxu0 0.0
    %849 = vmatprep.subr.mxu0 0.0
    %850 = vmatpush1.msra.mxu0 0.0
    %851 = vmatprep.subr.mxu0 0.0
    %852 = vmatpush1.msra.mxu0 0.0
    %853 = vmatprep.subr.mxu0 0.0
    %854 = vmatpush1.msra.mxu0 0.0
    %855 = vmatprep.subr.mxu0 0.0
    %856 = vmatpush1.msra.mxu0 0.0
    %857 = vmatprep.subr.mxu0 0.0
    %858 = vmatpush1.msra.mxu0 0.0
    %859 = vmatprep.subr.mxu0 0.0
    %860 = vmatpush1.msra.mxu0 0.0
    %861 = vmatprep.subr.mxu0 0.0
    %862 = vmatpush1.msra.mxu0 0.0
    %863 = vmatprep.subr.mxu0 0.0
    %864 = vmatpush1.msra.mxu0 0.0
    %865 = vmatprep.subr.mxu0 0.0
    %866 = vmatpush1.msra.mxu0 0.0
    %867 = vmatprep.subr.mxu0 0.0
    %868 = vmatpush1.msra.mxu0 0.0
    %869 = vmatprep.subr.mxu0 0.0
    %870 = vmatpush1.msra.mxu0 0.0
    %871 = vmatprep.subr.mxu0 0.0
    %872 = vmatpush1.msra.mxu0 0.0
    %873 = vmatprep.subr.mxu0 0.0
    %874 = vmatpush1.msra.mxu0 0.0
    %875 = vmatprep.subr.mxu0 0.0
    %876 = vmatpush1.msra.mxu0 0.0
    %877 = vmatprep.subr.mxu0 0.0
    %878 = vmatpush1.msra.mxu0 0.0
    %879 = vmatprep.subr.mxu0 0.0
    %880 = vmatpush1.msra.mxu0 0.0
    %881 = vmatprep.subr.mxu0 0.0
    %882 = vmatpush1.msra.mxu0 0.0
    %883 = vmatprep.subr.mxu0 0.0
    %884 = vmatpush1.msra.mxu0 0.0
    %885 = vmatprep.subr.mxu0 0.0
    %886 = vmatpush1.msra.mxu0 0.0
    %887 = vmatprep.mubr.f32.mxu0 0.0
    %888 = vmatmul.mubr.f32.gmra.mrb[0].mxu0 %v336
    %v889 = vpop.f32.mrb[0].mxu0
    %v890 = vadd.f32 %v332, %v889
    %v891 = vpop.f32.mrb[0].mxu0
    %892 = vdwg.mxu0
    %v893 = vsel %vm408, %v890, 0.0
    %894 = vadd.xlane.f32.xlu0 %v893
    %v895 = vpop.xlane.xlu0 %894
    %v896 = vsel %vm300, %v895, 0.0
    %v897 = vrot.slane %v896, 4
    %v898 = vadd.f32 %v896, %v897
    %v899 = vrot.slane %v898, 2
    %v900 = vadd.f32 %v898, %v899
    %v901 = vrot.slane %v900, 1
    %v902 = vadd.f32 %v900, %v901
    %v903 = vmul.f32 %v902, 0.015625
    %v904 = vsub.f32 %v890, %v903
    %v905 = vmul.f32 %v904, %v904
    %v906 = vsel %vm408, %v905, 0.0
    %907 = vadd.xlane.f32.xlu0 %v906
    %v908 = vpop.xlane.xlu0 %907
    %v909 = vsel %vm300, %v908, 0.0
    %v910 = vrot.slane %v909, 4
    %v911 = vadd.f32 %v909, %v910
    %v912 = vrot.slane %v911, 2
    %v913 = vadd.f32 %v911, %v912
    %v914 = vrot.slane %v913, 1
    %v915 = vadd.f32 %v913, %v914
    %v916 = vmul.f32 %v915, 0.015625
    %v917 = vadd.f32 %v916, 1e-05
    %v918 = vrsqrt.pop %v917
    %v919 = vmul.f32 %v904, %v918
    %v920 = vmul.f32 %v919, %v54
    %v921 = vadd.f32 %v920, %v55
    %923 = vrot.lane.b32.xlu0 %v921, 3
    %v924 = vpop.permute.xlu0 %923
    %v926 = vsel %vm306, 0.0, %v924
    %v927 = vsel %vm308, %v926, 0.0
    %v929 = vrot.slane %v927, 4
    %930 = vrot.lane.b32.xlu0 %v929, 127
    %v931 = vpop.permute.xlu0 %930
    %933 = vrot.lane.b32.xlu0 %v927, 126
    %v934 = vpop.permute.xlu0 %933
    %936 = vrot.lane.b32.xlu0 %v929, 125
    %v937 = vpop.permute.xlu0 %936
    %939 = vrot.lane.b32.xlu0 %v927, 124
    %v940 = vpop.permute.xlu0 %939
    %942 = vrot.lane.b32.xlu0 %v929, 123
    %v943 = vpop.permute.xlu0 %942
    %945 = vrot.lane.b32.xlu0 %v927, 122
    %v946 = vpop.permute.xlu0 %945
    %v947 = vsel %vm300, %v927, %v931
    %v948 = vsel %vm300, %v934, %v937
    %v949 = vsel %vm300, %v940, %v943
    %v950 = vsel %vm300, %v946, 0
    %952 = vmatprep.subr.mxu0 0.0
    %953 = vmatpush1.msra.mxu0 %v947
    %954 = vmatprep.subr.mxu0 0.0
    %955 = vmatpush1.msra.mxu0 %v948
    %956 = vmatprep.subr.mxu0 0.0
    %957 = vmatpush1.msra.mxu0 %v949
    %958 = vmatprep.subr.mxu0 0.0
    %959 = vmatpush1.msra.mxu0 %v950
    %960 = vmatprep.subr.mxu0 0.0
    %961 = vmatpush1.msra.mxu0 0.0
    %962 = vmatprep.subr.mxu0 0.0
    %963 = vmatpush1.msra.mxu0 0.0
    %964 = vmatprep.subr.mxu0 0.0
    %965 = vmatpush1.msra.mxu0 0.0
    %966 = vmatprep.subr.mxu0 0.0
    %967 = vmatpush1.msra.mxu0 0.0
    %968 = vmatprep.subr.mxu0 0.0
    %969 = vmatpush1.msra.mxu0 0.0
    %970 = vmatprep.subr.mxu0 0.0
    %971 = vmatpush1.msra.mxu0 0.0
    %972 = vmatprep.subr.mxu0 0.0
    %973 = vmatpush1.msra.mxu0 0.0
    %974 = vmatprep.subr.mxu0 0.0
    %975 = vmatpush1.msra.mxu0 0.0
    %976 = vmatprep.subr.mxu0 0.0
    %977 = vmatpush1.msra.mxu0 0.0
    %978 = vmatprep.subr.mxu0 0.0
    %979 = vmatpush1.msra.mxu0 0.0
    %980 = vmatprep.subr.mxu0 0.0
    %981 = vmatpush1.msra.mxu0 0.0
    %982 = vmatprep.subr.mxu0 0.0
    %983 = vmatpush1.msra.mxu0 0.0
    %984 = vmatprep.subr.mxu0 0.0
    %985 = vmatpush1.msra.mxu0 0.0
    %986 = vmatprep.subr.mxu0 0.0
    %987 = vmatpush1.msra.mxu0 0.0
    %988 = vmatprep.subr.mxu0 0.0
    %989 = vmatpush1.msra.mxu0 0.0
    %990 = vmatprep.subr.mxu0 0.0
    %991 = vmatpush1.msra.mxu0 0.0
    %992 = vmatprep.subr.mxu0 0.0
    %993 = vmatpush1.msra.mxu0 0.0
    %994 = vmatprep.subr.mxu0 0.0
    %995 = vmatpush1.msra.mxu0 0.0
    %996 = vmatprep.subr.mxu0 0.0
    %997 = vmatpush1.msra.mxu0 0.0
    %998 = vmatprep.subr.mxu0 0.0
    %999 = vmatpush1.msra.mxu0 0.0
    %1000 = vmatprep.subr.mxu0 0.0
    %1001 = vmatpush1.msra.mxu0 0.0
    %1002 = vmatprep.subr.mxu0 0.0
    %1003 = vmatpush1.msra.mxu0 0.0
    %1004 = vmatprep.subr.mxu0 0.0
    %1005 = vmatpush1.msra.mxu0 0.0
    %1006 = vmatprep.subr.mxu0 0.0
    %1007 = vmatpush1.msra.mxu0 0.0
    %1008 = vmatprep.subr.mxu0 0.0
    %1009 = vmatpush1.msra.mxu0 0.0
    %1010 = vmatprep.subr.mxu0 0.0
    %1011 = vmatpush1.msra.mxu0 0.0
    %1012 = vmatprep.subr.mxu0 0.0
    %1013 = vmatpush1.msra.mxu0 0.0
    %1014 = vmatprep.subr.mxu0 0.0
    %1015 = vmatpush1.msra.mxu0 0.0
    %1016 = vmatprep.mubr.f32.mxu0 0.0
    %1017 = vmatmul.mubr.f32.gmra.mrb[0].mxu0 %v473
    %v1018 = vpop.f32.mrb[0].mxu0
    %v1019 = vadd.f32 %v469, %v1018
    %v1020 = vpop.f32.mrb[0].mxu0
    %1021 = vdwg.mxu0
    %v1022 = vmul.f32 %v1019, 0.5
    %v1023 = vmul.f32 %v1019, 0.70710677
    %v1024 = vand.u32 2147483647, %v1023
    %v1025 = vmul.f32 %v1024, 0.3275911
    %v1026 = vadd.f32 %v1025, 1.0
    %v1027 = vrcp.pop %v1026
    %v1028 = vmul.f32 1.0, %v1027
    %v1029 = vmul.f32 %v1028, 1.0614054
    %v1030 = vadd.f32 %v1029, -1.4531521
    %v1031 = vmul.f32 %v1030, %v1028
    %v1032 = vadd.f32 %v1031, 1.4214138
    %v1033 = vmul.f32 %v1032, %v1028
    %v1034 = vadd.f32 %v1033, -0.28449672
    %v1035 = vmul.f32 %v1034, %v1028
    %v1036 = vadd.f32 %v1035, 0.2548296
    %v1037 = vmul.f32 %v1036, %v1028
    %v1038 = vsub.f32 0.0, %v1024
    %v1039 = vmul.f32 %v1038, %v1024
    %v1040 = vmul.f32 %v1039, 1.442695
    %v1041 = vpow.pop %v1040
    %v1042 = vmul.f32 %v1037, %v1041
    %v1043 = vsub.f32 1.0, %v1042
    %vm1044 = vcmp.ge.f32.partialorder %v1023, 0.0
    %v1045 = vsub.f32 0.0, %v1043
    %v1046 = vsel %vm1044, %v1043, %v1045
    %v1047 = vadd.f32 %v1046, 1.0
    %v1048 = vmul.f32 %v1022, %v1047
    %v1050 = vrot.slane %v1048, 4
    %v1052 = vsel %vm300, %v573, %v1050
    %vm1053 = vcmask 130048
    %1054 = vst.msk [vmem:[#allocation5] sm:$0xff] %vm1053, %v1052
    // Predicated region
    $region46: #{tpu_custom_call.1} parent=1 // pred_check
      _
    $region47: #{tpu_custom_call.1} parent=1 // pred_check_branch
      %1056 = sbr.rel (0) target = $region49
    $region48: #{tpu_custom_call.1} parent=1 // pred_region
      %s1058 = ssub.s32 128, 128
      %1059 = vsyncadd [#allocation4], %s1058
      %s1061 = sshll.u32 [#allocation5], 4
      %s1062 = int_to_ptr.vmem [resolvable:$true] %s1061
      %1064 = dma.vmem_to_hbm [thread:$0]  %s1062, 128, %s10, [#allocation4]
    $region49: #{tpu_custom_call.1} parent=1 // pred_fallthru
      _
    // Predicated region
    $region50: #{tpu_custom_call.1} parent=1 // pred_check
      _
    $region51: #{tpu_custom_call.1} parent=1 // pred_check_branch
      %1066 = sbr.rel (0) target = $region53
    $region52: #{tpu_custom_call.1} parent=1 // pred_region
      %1067 = dma.done [#allocation4], 128
    $region53: #{tpu_custom_call.1} parent=1 // pred_fallthru
      _
    %1068 = vsyncpa [#allocation3], 1
    %1069 = vsyncpa [#allocation4], 1

</llo_original>
